<compile_context>
chip_gen: v6e
topology: v6e:2x2x1
jax: 0.10.0
libtpu: 0.0.40
codegen_flags: <defaults>
</compile_context>

<pallas_src>
import jax
import jax.numpy as jnp
from jax import lax
from jax.experimental import pallas as pl
from jax.experimental.pallas import tpu as pltpu


HIDDEN_SIZE = 32     # small demo size (module default is 256; kernel works for either)
INPUT_SIZE = 16      # vocab size
SEQ_LEN = 8          # demo sequence length

_LANE = 128
_SUBLANE = 8


def _round_up(x, m):
    return (x + m - 1) // m * m


# ----------------------------------------------------------------------------
# Kernel: whole embedded GRU sequence in ONE grid step.
# ----------------------------------------------------------------------------
def gru_seq_kernel(tok_ref, emb_ref, h0_ref, wx_ref, wh_ref, bx_ref, bhn_ref, out_ref):
    """
    tok_ref : SMEM (Tp,) int32   scalar-prefetched token ids (padded with 0)
    emb_ref : VMEM (Vp, Hp)      padded embedding table (resident)
    h0_ref  : VMEM (8, Hp)       initial hidden; row 0 real, rows 1..7 zero
    wx_ref  : VMEM (Hp, 3Hp)     input-gate weights  [W_ir^T | W_iz^T | W_in^T]
    wh_ref  : VMEM (Hp, 3Hp)     hidden-gate weights [W_hr^T | W_hz^T | W_hn^T]
    bx_ref  : VMEM (1, 3Hp)      [b_ir+b_hr | b_iz+b_hz | b_in]  (added once)
    bhn_ref : VMEM (8, Hp)       b_hn pre-broadcast across sublanes
    out_ref : VMEM (Tp, Hp)      per-timestep hidden states (row 0 of the carry)
    """
    Tp = tok_ref.shape[0]
    Hp = h0_ref.shape[-1]
    Vp = emb_ref.shape[0]

    # ---- In-kernel embedding gather as a one-hot MXU matmul (tiny vocab). ----
    lane_ids = lax.broadcasted_iota(jnp.int32, (1, Vp), 1)
    rows = [jnp.where(lane_ids == tok_ref[t], 1.0, 0.0) for t in range(Tp)]
    onehot = jnp.concatenate(rows, axis=0)                                    # (Tp, Vp)
    x = jnp.dot(onehot, emb_ref[...], preferred_element_type=jnp.float32)     # (Tp, Hp)

    # ---- Input projection hoisted out of the recurrence (one MXU matmul). ----
    # r/z biases and b_in are folded into bx, added once for all timesteps.
    xp = jnp.dot(x, wx_ref[...], preferred_element_type=jnp.float32) + bx_ref[...]  # (Tp, 3Hp)

    b_hn = bhn_ref[...]          # (8, Hp), already sublane-broadcast
    h = h0_ref[...]              # (8, Hp); only row 0 is the real batch row

    outs = []
    # Fully-unrolled recurrence: only the h projection is serialized per step.
    for t in range(Tp):
        gh = jnp.dot(h, wh_ref[...], preferred_element_type=jnp.float32)      # (8, 3Hp)
        r = jax.nn.sigmoid(xp[t:t + 1, 0:Hp] + gh[:, 0:Hp])
        z = jax.nn.sigmoid(xp[t:t + 1, Hp:2 * Hp] + gh[:, Hp:2 * Hp])
        n = jnp.tanh(xp[t:t + 1, 2 * Hp:] + r * (gh[:, 2 * Hp:] + b_hn))
        h = (1.0 - z) * n + z * h
        outs.append(h[0:1, :])                                                # real batch row

    out_ref[...] = jnp.concatenate(outs, axis=0)                              # one dense store


def _gru_sequence_pallas(tokens_p, emb_p, h0, w_x, w_h, b_x, b_hn):
    """tokens_p: (Tp,) int32; returns per-step hidden states (Tp, Hp) f32."""
    Tp = tokens_p.shape[0]
    Vp, Hp = emb_p.shape
    grid_spec = pltpu.PrefetchScalarGridSpec(
        num_scalar_prefetch=1,                 # token ids -> SMEM
        grid=(1,),                             # single grid step; loop lives in-kernel
        in_specs=[
            pl.BlockSpec((Vp, Hp), lambda i, tok: (0, 0)),          # embedding table
            pl.BlockSpec((_SUBLANE, Hp), lambda i, tok: (0, 0)),    # h0
            pl.BlockSpec((Hp, 3 * Hp), lambda i, tok: (0, 0)),      # W_x
            pl.BlockSpec((Hp, 3 * Hp), lambda i, tok: (0, 0)),      # W_h
            pl.BlockSpec((1, 3 * Hp), lambda i, tok: (0, 0)),       # fused x-side biases
            pl.BlockSpec((_SUBLANE, Hp), lambda i, tok: (0, 0)),    # b_hn (pre-broadcast)
        ],
        out_specs=pl.BlockSpec((Tp, Hp), lambda i, tok: (0, 0)),
    )
    return pl.pallas_call(
        gru_seq_kernel,
        out_shape=jax.ShapeDtypeStruct((Tp, Hp), jnp.float32),
        grid_spec=grid_spec,
        compiler_params=pltpu.CompilerParams(dimension_semantics=("arbitrary",)),
    )(tokens_p, emb_p, h0, w_x, w_h, b_x, b_hn)


# ----------------------------------------------------------------------------
# Parameters (PyTorch-equivalent shapes) and one-time host-side preparation.
# ----------------------------------------------------------------------------
def init_params(key, input_size, hidden_size):
    k_emb, k_wih, k_whh, k_bih, k_bhh = jax.random.split(key, 5)
    scale = 1.0 / jnp.sqrt(hidden_size)
    return {
        # nn.Embedding(input_size, hidden_size).weight : (V, H)
        "embedding": jax.random.normal(k_emb, (input_size, hidden_size), jnp.float32),
        # nn.GRU weight_ih_l0 (3H, H), weight_hh_l0 (3H, H), biases (3H,) — gate order [r; z; n]
        "weight_ih": jax.random.uniform(k_wih, (3 * hidden_size, hidden_size),
                                        jnp.float32, -scale, scale),
        "weight_hh": jax.random.uniform(k_whh, (3 * hidden_size, hidden_size),
                                        jnp.float32, -scale, scale),
        "bias_ih": jax.random.uniform(k_bih, (3 * hidden_size,), jnp.float32, -scale, scale),
        "bias_hh": jax.random.uniform(k_bhh, (3 * hidden_size,), jnp.float32, -scale, scale),
    }


def prepare_encoder_params(params, hidden_size):
    """One-time prep: lane/sublane padding, W_ih/W_hh split (transposed, gate
    blocks r|z|n along columns), and bias fusion/pre-broadcast."""
    H = hidden_size
    Hp = _round_up(max(H, _LANE), _LANE)
    V = params["embedding"].shape[0]
    Vp = _round_up(max(V, _LANE), _LANE)

    wih, whh = params["weight_ih"], params["weight_hh"]
    bih, bhh = params["bias_ih"], params["bias_hh"]

    w_x = jnp.zeros((Hp, 3 * Hp), jnp.float32)
    w_h = jnp.zeros((Hp, 3 * Hp), jnp.float32)
    for g in range(3):  # gate order r, z, n
        w_x = w_x.at[0:H, g * Hp:g * Hp + H].set(wih[g * H:(g + 1) * H, :].T)
        w_h = w_h.at[0:H, g * Hp:g * Hp + H].set(whh[g * H:(g + 1) * H, :].T)

    # x-side biases, with the r/z hidden biases folded in (added once, outside the loop).
    b_x = jnp.zeros((1, 3 * Hp), jnp.float32)
    b_x = b_x.at[0, 0:H].set(bih[0:H] + bhh[0:H])                 # r
    b_x = b_x.at[0, Hp:Hp + H].set(bih[H:2 * H] + bhh[H:2 * H])   # z
    b_x = b_x.at[0, 2 * Hp:2 * Hp + H].set(bih[2 * H:])           # i_n

    # b_hn stays inside r * (h W_hn^T + b_hn); pre-broadcast to (8, Hp).
    b_hn = jnp.zeros((1, Hp), jnp.float32).at[0, 0:H].set(bhh[2 * H:])
    b_hn = jnp.tile(b_hn, (_SUBLANE, 1))

    emb_p = jnp.zeros((Vp, Hp), jnp.float32).at[0:V, 0:H].set(params["embedding"])

    return {"embedding_p": emb_p, "w_x": w_x, "w_h": w_h, "b_x": b_x, "b_hn": b_hn}


# ----------------------------------------------------------------------------
# Forward passes.
# ----------------------------------------------------------------------------
@jax.jit
def encoder_rnn_forward_seq(prep, tokens, hidden):
    """Run the encoder GRU over a whole token sequence in ONE pallas_call.

    tokens : (T,) int32 token indices
    hidden : (1, 1, H) f32 initial hidden state
    returns (outputs (T, 1, H), hidden_new (1, 1, H)) — identical to looping
    the PyTorch module's forward over the T tokens.
    """
    H = hidden.shape[-1]
    Hp = prep["w_h"].shape[0]
    T = tokens.shape[0]
    Tp = _round_up(T, _SUBLANE)

    # Pad the sequence at the END (harmless: outputs[t] only depends on tokens[<=t]).
    tokens_p = jnp.zeros((Tp,), jnp.int32).at[0:T].set(tokens.astype(jnp.int32))
    h0 = jnp.zeros((_SUBLANE, Hp), jnp.float32).at[0, 0:H].set(hidden.reshape(H))

    out_p = _gru_sequence_pallas(tokens_p, prep["embedding_p"], h0,
                                 prep["w_x"], prep["w_h"], prep["b_x"], prep["b_hn"])
    outputs = out_p[0:T, 0:H].reshape(T, 1, H)
    hidden_new = outputs[-1].reshape(1, 1, H)
    return outputs, hidden_new


def encoder_rnn_forward(prep, token, hidden):
    """Mirrors EncoderRNN.forward for a single token (seq=1, batch=1)."""
    tokens = jnp.reshape(jnp.asarray(token, jnp.int32), (1,))
    outputs, hidden_new = encoder_rnn_forward_seq(prep, tokens, hidden)
    return outputs.reshape(1, 1, -1), hidden_new


def init_hidden(hidden_size):
    return jnp.zeros((1, 1, hidden_size), jnp.float32)


# ----------------------------------------------------------------------------
# Pure-JAX reference (unfused, unpadded) for correctness checking.
# ----------------------------------------------------------------------------
def _reference_gru_step(params, x, h):
    H = h.shape[-1]
    gi = x @ params["weight_ih"].T + params["bias_ih"]
    gh = h @ params["weight_hh"].T + params["bias_hh"]
    i_r, i_z, i_n = gi[:, :H], gi[:, H:2 * H], gi[:, 2 * H:]
    h_r, h_z, h_n = gh[:, :H], gh[:, H:2 * H], gh[:, 2 * H:]
    r = jax.nn.sigmoid(i_r + h_r)
    z = jax.nn.sigmoid(i_z + h_z)
    n = jnp.tanh(i_n + r * h_n)
    return (1.0 - z) * n + z * h


def _reference_forward_seq(params, tokens, hidden):
    H = hidden.shape[-1]
    h = hidden.reshape(1, H)
    outs = []
    for t in range(tokens.shape[0]):
        x = params["embedding"][tokens[t]].reshape(1, H)
        h = _reference_gru_step(params, x, h)
        outs.append(h)
    return jnp.stack(outs, 0), h.reshape(1, 1, H)


if __name__ == "__main__":
    root = jax.random.PRNGKey(0)
    k_params, k_tokens = jax.random.split(root)

    params = init_params(k_params, INPUT_SIZE, HIDDEN_SIZE)
    prep = prepare_encoder_params(params, HIDDEN_SIZE)

    tokens = jax.random.randint(k_tokens, (SEQ_LEN,), 0, INPUT_SIZE, dtype=jnp.int32)
    hidden0 = init_hidden(HIDDEN_SIZE)

    # Full-sequence encoder pass: one kernel launch, one weight DMA, in-kernel recurrence.
    outputs, hidden_T = encoder_rnn_forward_seq(prep, tokens, hidden0)
    outputs = jax.block_until_ready(outputs)
    hidden_T = jax.block_until_ready(hidden_T)

    ref_outs, ref_hid = _reference_forward_seq(params, tokens, hidden0)
    assert outputs.shape == (SEQ_LEN, 1, HIDDEN_SIZE)
    assert hidden_T.shape == (1, 1, HIDDEN_SIZE)
    assert jnp.allclose(outputs, ref_outs, atol=1e-4, rtol=1e-4)
    assert jnp.allclose(hidden_T, ref_hid, atol=1e-4, rtol=1e-4)

    # Single-token path, mirroring EncoderRNN.forward(input_, hidden) exactly.
    out1, hid1 = encoder_rnn_forward(prep, tokens[0], hidden0)
    out1 = jax.block_until_ready(out1)
    x1 = params["embedding"][tokens[0]].reshape(1, HIDDEN_SIZE)
    ref1 = _reference_gru_step(params, x1, hidden0.reshape(1, HIDDEN_SIZE)).reshape(1, 1, HIDDEN_SIZE)
    assert out1.shape == (1, 1, HIDDEN_SIZE) and hid1.shape == (1, 1, HIDDEN_SIZE)
    assert jnp.allclose(out1, ref1, atol=1e-4, rtol=1e-4)
    assert jnp.allclose(hid1, ref1, atol=1e-4, rtol=1e-4)

    print("KERNEL_OK")
</pallas_src>

<mosaic_0001>
module attributes {stable_mosaic.version = 11 : i64} {
  func.func @gru_seq_kernel(%arg0: i32, %arg1: memref<8xi32, #tpu.memory_space<smem>>, %arg2: memref<128x128xf32, #tpu.memory_space<vmem>>, %arg3: memref<8x128xf32, #tpu.memory_space<vmem>>, %arg4: memref<128x384xf32, #tpu.memory_space<vmem>>, %arg5: memref<128x384xf32, #tpu.memory_space<vmem>>, %arg6: memref<1x384xf32, #tpu.memory_space<vmem>>, %arg7: memref<8x128xf32, #tpu.memory_space<vmem>>, %arg8: memref<8x128xf32, #tpu.memory_space<vmem>>) attributes {dimension_semantics = [#tpu.dimension_semantics<arbitrary>], iteration_bounds = array<i64: 1>, scalar_prefetch = 1 : i64, scratch_operands = 0 : i64, tpu.core_type = #tpu.core_type<tc>, window_params = [{pipeline_mode = #tpu.pipeline_mode<synchronous>, transform_indices = @transform_0, window_bounds = array<i64: 128, 128>}, {pipeline_mode = #tpu.pipeline_mode<synchronous>, transform_indices = @transform_1, window_bounds = array<i64: 8, 128>}, {pipeline_mode = #tpu.pipeline_mode<synchronous>, transform_indices = @transform_2, window_bounds = array<i64: 128, 384>}, {pipeline_mode = #tpu.pipeline_mode<synchronous>, transform_indices = @transform_3, window_bounds = array<i64: 128, 384>}, {pipeline_mode = #tpu.pipeline_mode<synchronous>, transform_indices = @transform_4, window_bounds = array<i64: 1, 384>}, {pipeline_mode = #tpu.pipeline_mode<synchronous>, transform_indices = @transform_5, window_bounds = array<i64: 8, 128>}, {pipeline_mode = #tpu.pipeline_mode<synchronous>, transform_indices = @transform_6, window_bounds = array<i64: 8, 128>}]} {
    %0 = tpu.iota {dimensions = array<i32: 1>} : vector<1x128xi32>
    %c0 = arith.constant 0 : index
    %1 = memref.load %arg1[%c0] : memref<8xi32, #tpu.memory_space<smem>>
    %2 = vector.broadcast %1 : i32 to vector<1x128xi32>
    %3 = arith.cmpi eq, %0, %2 : vector<1x128xi32>
    %cst = arith.constant 1.000000e+00 : f32
    %cst_0 = arith.constant 0.000000e+00 : f32
    %4 = vector.broadcast %cst : f32 to vector<1x128xf32>
    %5 = vector.broadcast %cst_0 : f32 to vector<1x128xf32>
    %6 = arith.select %3, %4, %5 : vector<1x128xi1>, vector<1x128xf32>
    %c1 = arith.constant 1 : index
    %7 = memref.load %arg1[%c1] : memref<8xi32, #tpu.memory_space<smem>>
    %8 = vector.broadcast %7 : i32 to vector<1x128xi32>
    %9 = arith.cmpi eq, %0, %8 : vector<1x128xi32>
    %cst_1 = arith.constant 1.000000e+00 : f32
    %cst_2 = arith.constant 0.000000e+00 : f32
    %10 = vector.broadcast %cst_1 : f32 to vector<1x128xf32>
    %11 = vector.broadcast %cst_2 : f32 to vector<1x128xf32>
    %12 = arith.select %9, %10, %11 : vector<1x128xi1>, vector<1x128xf32>
    %c2 = arith.constant 2 : index
    %13 = memref.load %arg1[%c2] : memref<8xi32, #tpu.memory_space<smem>>
    %14 = vector.broadcast %13 : i32 to vector<1x128xi32>
    %15 = arith.cmpi eq, %0, %14 : vector<1x128xi32>
    %cst_3 = arith.constant 1.000000e+00 : f32
    %cst_4 = arith.constant 0.000000e+00 : f32
    %16 = vector.broadcast %cst_3 : f32 to vector<1x128xf32>
    %17 = vector.broadcast %cst_4 : f32 to vector<1x128xf32>
    %18 = arith.select %15, %16, %17 : vector<1x128xi1>, vector<1x128xf32>
    %c3 = arith.constant 3 : index
    %19 = memref.load %arg1[%c3] : memref<8xi32, #tpu.memory_space<smem>>
    %20 = vector.broadcast %19 : i32 to vector<1x128xi32>
    %21 = arith.cmpi eq, %0, %20 : vector<1x128xi32>
    %cst_5 = arith.constant 1.000000e+00 : f32
    %cst_6 = arith.constant 0.000000e+00 : f32
    %22 = vector.broadcast %cst_5 : f32 to vector<1x128xf32>
    %23 = vector.broadcast %cst_6 : f32 to vector<1x128xf32>
    %24 = arith.select %21, %22, %23 : vector<1x128xi1>, vector<1x128xf32>
    %c4 = arith.constant 4 : index
    %25 = memref.load %arg1[%c4] : memref<8xi32, #tpu.memory_space<smem>>
    %26 = vector.broadcast %25 : i32 to vector<1x128xi32>
    %27 = arith.cmpi eq, %0, %26 : vector<1x128xi32>
    %cst_7 = arith.constant 1.000000e+00 : f32
    %cst_8 = arith.constant 0.000000e+00 : f32
    %28 = vector.broadcast %cst_7 : f32 to vector<1x128xf32>
    %29 = vector.broadcast %cst_8 : f32 to vector<1x128xf32>
    %30 = arith.select %27, %28, %29 : vector<1x128xi1>, vector<1x128xf32>
    %c5 = arith.constant 5 : index
    %31 = memref.load %arg1[%c5] : memref<8xi32, #tpu.memory_space<smem>>
    %32 = vector.broadcast %31 : i32 to vector<1x128xi32>
    %33 = arith.cmpi eq, %0, %32 : vector<1x128xi32>
    %cst_9 = arith.constant 1.000000e+00 : f32
    %cst_10 = arith.constant 0.000000e+00 : f32
    %34 = vector.broadcast %cst_9 : f32 to vector<1x128xf32>
    %35 = vector.broadcast %cst_10 : f32 to vector<1x128xf32>
    %36 = arith.select %33, %34, %35 : vector<1x128xi1>, vector<1x128xf32>
    %c6 = arith.constant 6 : index
    %37 = memref.load %arg1[%c6] : memref<8xi32, #tpu.memory_space<smem>>
    %38 = vector.broadcast %37 : i32 to vector<1x128xi32>
    %39 = arith.cmpi eq, %0, %38 : vector<1x128xi32>
    %cst_11 = arith.constant 1.000000e+00 : f32
    %cst_12 = arith.constant 0.000000e+00 : f32
    %40 = vector.broadcast %cst_11 : f32 to vector<1x128xf32>
    %41 = vector.broadcast %cst_12 : f32 to vector<1x128xf32>
    %42 = arith.select %39, %40, %41 : vector<1x128xi1>, vector<1x128xf32>
    %c7 = arith.constant 7 : index
    %43 = memref.load %arg1[%c7] : memref<8xi32, #tpu.memory_space<smem>>
    %44 = vector.broadcast %43 : i32 to vector<1x128xi32>
    %45 = arith.cmpi eq, %0, %44 : vector<1x128xi32>
    %cst_13 = arith.constant 1.000000e+00 : f32
    %cst_14 = arith.constant 0.000000e+00 : f32
    %46 = vector.broadcast %cst_13 : f32 to vector<1x128xf32>
    %47 = vector.broadcast %cst_14 : f32 to vector<1x128xf32>
    %48 = arith.select %45, %46, %47 : vector<1x128xi1>, vector<1x128xf32>
    %49 = tpu.concatenate %6, %12, %18, %24, %30, %36, %42, %48 in 0 : vector<1x128xf32>, vector<1x128xf32>, vector<1x128xf32>, vector<1x128xf32>, vector<1x128xf32>, vector<1x128xf32>, vector<1x128xf32>, vector<1x128xf32> -> vector<8x128xf32>
    %c0_15 = arith.constant 0 : index
    %c0_16 = arith.constant 0 : index
    %50 = vector.load %arg2[%c0_15, %c0_16] : memref<128x128xf32, #tpu.memory_space<vmem>>, vector<128x128xf32>
    %cst_17 = arith.constant dense<0.000000e+00> : vector<8x128xf32>
    %51 = tpu.matmul %49, %50, %cst_17 {dimension_numbers = #tpu.dot_dimension_numbers<[1], [0], [0], [1], [0, 0, 1, 1], [], []>} : vector<8x128xf32>, vector<128x128xf32>, vector<8x128xf32> -> vector<8x128xf32>
    %c0_18 = arith.constant 0 : index
    %c0_19 = arith.constant 0 : index
    %52 = vector.load %arg4[%c0_18, %c0_19] : memref<128x384xf32, #tpu.memory_space<vmem>>, vector<128x384xf32>
    %cst_20 = arith.constant dense<0.000000e+00> : vector<8x384xf32>
    %53 = tpu.matmul %51, %52, %cst_20 {dimension_numbers = #tpu.dot_dimension_numbers<[1], [0], [0], [1], [0, 0, 1, 1], [], []>} : vector<8x128xf32>, vector<128x384xf32>, vector<8x384xf32> -> vector<8x384xf32>
    %c0_21 = arith.constant 0 : index
    %c0_22 = arith.constant 0 : index
    %54 = vector.load %arg6[%c0_21, %c0_22] : memref<1x384xf32, #tpu.memory_space<vmem>>, vector<1x384xf32>
    %55 = vector.broadcast %54 : vector<1x384xf32> to vector<8x384xf32>
    %56 = arith.addf %53, %55 : vector<8x384xf32>
    %c0_23 = arith.constant 0 : index
    %c0_24 = arith.constant 0 : index
    %57 = vector.load %arg7[%c0_23, %c0_24] : memref<8x128xf32, #tpu.memory_space<vmem>>, vector<8x128xf32>
    %c0_25 = arith.constant 0 : index
    %c0_26 = arith.constant 0 : index
    %58 = vector.load %arg3[%c0_25, %c0_26] : memref<8x128xf32, #tpu.memory_space<vmem>>, vector<8x128xf32>
    %c0_27 = arith.constant 0 : index
    %c0_28 = arith.constant 0 : index
    %59 = vector.load %arg5[%c0_27, %c0_28] : memref<128x384xf32, #tpu.memory_space<vmem>>, vector<128x384xf32>
    %cst_29 = arith.constant dense<0.000000e+00> : vector<8x384xf32>
    %60 = tpu.matmul %58, %59, %cst_29 {dimension_numbers = #tpu.dot_dimension_numbers<[1], [0], [0], [1], [0, 0, 1, 1], [], []>} : vector<8x128xf32>, vector<128x384xf32>, vector<8x384xf32> -> vector<8x384xf32>
    %61 = vector.extract_strided_slice %56 {offsets = [0, 0], sizes = [1, 128], strides = [1, 1]} : vector<8x384xf32> to vector<1x128xf32>
    %62 = vector.extract_strided_slice %60 {offsets = [0, 0], sizes = [8, 128], strides = [1, 1]} : vector<8x384xf32> to vector<8x128xf32>
    %63 = vector.broadcast %61 : vector<1x128xf32> to vector<8x128xf32>
    %64 = arith.addf %63, %62 : vector<8x128xf32>
    %65 = arith.negf %64 : vector<8x128xf32>
    %66 = math.exp %65 : vector<8x128xf32>
    %cst_30 = arith.constant 1.000000e+00 : f32
    %67 = vector.broadcast %cst_30 : f32 to vector<8x128xf32>
    %68 = arith.addf %67, %66 : vector<8x128xf32>
    %69 = arith.divf %67, %68 : vector<8x128xf32>
    %70 = vector.extract_strided_slice %56 {offsets = [0, 128], sizes = [1, 128], strides = [1, 1]} : vector<8x384xf32> to vector<1x128xf32>
    %71 = vector.extract_strided_slice %60 {offsets = [0, 128], sizes = [8, 128], strides = [1, 1]} : vector<8x384xf32> to vector<8x128xf32>
    %72 = vector.broadcast %70 : vector<1x128xf32> to vector<8x128xf32>
    %73 = arith.addf %72, %71 : vector<8x128xf32>
    %74 = arith.negf %73 : vector<8x128xf32>
    %75 = math.exp %74 : vector<8x128xf32>
    %cst_31 = arith.constant 1.000000e+00 : f32
    %76 = vector.broadcast %cst_31 : f32 to vector<8x128xf32>
    %77 = arith.addf %76, %75 : vector<8x128xf32>
    %78 = arith.divf %76, %77 : vector<8x128xf32>
    %79 = vector.extract_strided_slice %56 {offsets = [0, 256], sizes = [1, 128], strides = [1, 1]} : vector<8x384xf32> to vector<1x128xf32>
    %80 = vector.extract_strided_slice %60 {offsets = [0, 256], sizes = [8, 128], strides = [1, 1]} : vector<8x384xf32> to vector<8x128xf32>
    %81 = arith.addf %80, %57 : vector<8x128xf32>
    %82 = arith.mulf %69, %81 : vector<8x128xf32>
    %83 = vector.broadcast %79 : vector<1x128xf32> to vector<8x128xf32>
    %84 = arith.addf %83, %82 : vector<8x128xf32>
    %85 = math.tanh %84 : vector<8x128xf32>
    %cst_32 = arith.constant 1.000000e+00 : f32
    %86 = vector.broadcast %cst_32 : f32 to vector<8x128xf32>
    %87 = arith.subf %86, %78 : vector<8x128xf32>
    %88 = arith.mulf %87, %85 : vector<8x128xf32>
    %89 = arith.mulf %78, %58 : vector<8x128xf32>
    %90 = arith.addf %88, %89 : vector<8x128xf32>
    %91 = vector.extract_strided_slice %90 {offsets = [0, 0], sizes = [1, 128], strides = [1, 1]} : vector<8x128xf32> to vector<1x128xf32>
    %c0_33 = arith.constant 0 : index
    %c0_34 = arith.constant 0 : index
    %92 = vector.load %arg5[%c0_33, %c0_34] : memref<128x384xf32, #tpu.memory_space<vmem>>, vector<128x384xf32>
    %cst_35 = arith.constant dense<0.000000e+00> : vector<8x384xf32>
    %93 = tpu.matmul %90, %92, %cst_35 {dimension_numbers = #tpu.dot_dimension_numbers<[1], [0], [0], [1], [0, 0, 1, 1], [], []>} : vector<8x128xf32>, vector<128x384xf32>, vector<8x384xf32> -> vector<8x384xf32>
    %94 = vector.extract_strided_slice %56 {offsets = [1, 0], sizes = [1, 128], strides = [1, 1]} : vector<8x384xf32> to vector<1x128xf32>
    %95 = vector.extract_strided_slice %93 {offsets = [0, 0], sizes = [8, 128], strides = [1, 1]} : vector<8x384xf32> to vector<8x128xf32>
    %96 = vector.broadcast %94 : vector<1x128xf32> to vector<8x128xf32>
    %97 = arith.addf %96, %95 : vector<8x128xf32>
    %98 = arith.negf %97 : vector<8x128xf32>
    %99 = math.exp %98 : vector<8x128xf32>
    %cst_36 = arith.constant 1.000000e+00 : f32
    %100 = vector.broadcast %cst_36 : f32 to vector<8x128xf32>
    %101 = arith.addf %100, %99 : vector<8x128xf32>
    %102 = arith.divf %100, %101 : vector<8x128xf32>
    %103 = vector.extract_strided_slice %56 {offsets = [1, 128], sizes = [1, 128], strides = [1, 1]} : vector<8x384xf32> to vector<1x128xf32>
    %104 = vector.extract_strided_slice %93 {offsets = [0, 128], sizes = [8, 128], strides = [1, 1]} : vector<8x384xf32> to vector<8x128xf32>
    %105 = vector.broadcast %103 : vector<1x128xf32> to vector<8x128xf32>
    %106 = arith.addf %105, %104 : vector<8x128xf32>
    %107 = arith.negf %106 : vector<8x128xf32>
    %108 = math.exp %107 : vector<8x128xf32>
    %cst_37 = arith.constant 1.000000e+00 : f32
    %109 = vector.broadcast %cst_37 : f32 to vector<8x128xf32>
    %110 = arith.addf %109, %108 : vector<8x128xf32>
    %111 = arith.divf %109, %110 : vector<8x128xf32>
    %112 = vector.extract_strided_slice %56 {offsets = [1, 256], sizes = [1, 128], strides = [1, 1]} : vector<8x384xf32> to vector<1x128xf32>
    %113 = vector.extract_strided_slice %93 {offsets = [0, 256], sizes = [8, 128], strides = [1, 1]} : vector<8x384xf32> to vector<8x128xf32>
    %114 = arith.addf %113, %57 : vector<8x128xf32>
    %115 = arith.mulf %102, %114 : vector<8x128xf32>
    %116 = vector.broadcast %112 : vector<1x128xf32> to vector<8x128xf32>
    %117 = arith.addf %116, %115 : vector<8x128xf32>
    %118 = math.tanh %117 : vector<8x128xf32>
    %cst_38 = arith.constant 1.000000e+00 : f32
    %119 = vector.broadcast %cst_38 : f32 to vector<8x128xf32>
    %120 = arith.subf %119, %111 : vector<8x128xf32>
    %121 = arith.mulf %120, %118 : vector<8x128xf32>
    %122 = arith.mulf %111, %90 : vector<8x128xf32>
    %123 = arith.addf %121, %122 : vector<8x128xf32>
    %124 = vector.extract_strided_slice %123 {offsets = [0, 0], sizes = [1, 128], strides = [1, 1]} : vector<8x128xf32> to vector<1x128xf32>
    %c0_39 = arith.constant 0 : index
    %c0_40 = arith.constant 0 : index
    %125 = vector.load %arg5[%c0_39, %c0_40] : memref<128x384xf32, #tpu.memory_space<vmem>>, vector<128x384xf32>
    %cst_41 = arith.constant dense<0.000000e+00> : vector<8x384xf32>
    %126 = tpu.matmul %123, %125, %cst_41 {dimension_numbers = #tpu.dot_dimension_numbers<[1], [0], [0], [1], [0, 0, 1, 1], [], []>} : vector<8x128xf32>, vector<128x384xf32>, vector<8x384xf32> -> vector<8x384xf32>
    %127 = vector.extract_strided_slice %56 {offsets = [2, 0], sizes = [1, 128], strides = [1, 1]} : vector<8x384xf32> to vector<1x128xf32>
    %128 = vector.extract_strided_slice %126 {offsets = [0, 0], sizes = [8, 128], strides = [1, 1]} : vector<8x384xf32> to vector<8x128xf32>
    %129 = vector.broadcast %127 : vector<1x128xf32> to vector<8x128xf32>
    %130 = arith.addf %129, %128 : vector<8x128xf32>
    %131 = arith.negf %130 : vector<8x128xf32>
    %132 = math.exp %131 : vector<8x128xf32>
    %cst_42 = arith.constant 1.000000e+00 : f32
    %133 = vector.broadcast %cst_42 : f32 to vector<8x128xf32>
    %134 = arith.addf %133, %132 : vector<8x128xf32>
    %135 = arith.divf %133, %134 : vector<8x128xf32>
    %136 = vector.extract_strided_slice %56 {offsets = [2, 128], sizes = [1, 128], strides = [1, 1]} : vector<8x384xf32> to vector<1x128xf32>
    %137 = vector.extract_strided_slice %126 {offsets = [0, 128], sizes = [8, 128], strides = [1, 1]} : vector<8x384xf32> to vector<8x128xf32>
    %138 = vector.broadcast %136 : vector<1x128xf32> to vector<8x128xf32>
    %139 = arith.addf %138, %137 : vector<8x128xf32>
    %140 = arith.negf %139 : vector<8x128xf32>
    %141 = math.exp %140 : vector<8x128xf32>
    %cst_43 = arith.constant 1.000000e+00 : f32
    %142 = vector.broadcast %cst_43 : f32 to vector<8x128xf32>
    %143 = arith.addf %142, %141 : vector<8x128xf32>
    %144 = arith.divf %142, %143 : vector<8x128xf32>
    %145 = vector.extract_strided_slice %56 {offsets = [2, 256], sizes = [1, 128], strides = [1, 1]} : vector<8x384xf32> to vector<1x128xf32>
    %146 = vector.extract_strided_slice %126 {offsets = [0, 256], sizes = [8, 128], strides = [1, 1]} : vector<8x384xf32> to vector<8x128xf32>
    %147 = arith.addf %146, %57 : vector<8x128xf32>
    %148 = arith.mulf %135, %147 : vector<8x128xf32>
    %149 = vector.broadcast %145 : vector<1x128xf32> to vector<8x128xf32>
    %150 = arith.addf %149, %148 : vector<8x128xf32>
    %151 = math.tanh %150 : vector<8x128xf32>
    %cst_44 = arith.constant 1.000000e+00 : f32
    %152 = vector.broadcast %cst_44 : f32 to vector<8x128xf32>
    %153 = arith.subf %152, %144 : vector<8x128xf32>
    %154 = arith.mulf %153, %151 : vector<8x128xf32>
    %155 = arith.mulf %144, %123 : vector<8x128xf32>
    %156 = arith.addf %154, %155 : vector<8x128xf32>
    %157 = vector.extract_strided_slice %156 {offsets = [0, 0], sizes = [1, 128], strides = [1, 1]} : vector<8x128xf32> to vector<1x128xf32>
    %c0_45 = arith.constant 0 : index
    %c0_46 = arith.constant 0 : index
    %158 = vector.load %arg5[%c0_45, %c0_46] : memref<128x384xf32, #tpu.memory_space<vmem>>, vector<128x384xf32>
    %cst_47 = arith.constant dense<0.000000e+00> : vector<8x384xf32>
    %159 = tpu.matmul %156, %158, %cst_47 {dimension_numbers = #tpu.dot_dimension_numbers<[1], [0], [0], [1], [0, 0, 1, 1], [], []>} : vector<8x128xf32>, vector<128x384xf32>, vector<8x384xf32> -> vector<8x384xf32>
    %160 = vector.extract_strided_slice %56 {offsets = [3, 0], sizes = [1, 128], strides = [1, 1]} : vector<8x384xf32> to vector<1x128xf32>
    %161 = vector.extract_strided_slice %159 {offsets = [0, 0], sizes = [8, 128], strides = [1, 1]} : vector<8x384xf32> to vector<8x128xf32>
    %162 = vector.broadcast %160 : vector<1x128xf32> to vector<8x128xf32>
    %163 = arith.addf %162, %161 : vector<8x128xf32>
    %164 = arith.negf %163 : vector<8x128xf32>
    %165 = math.exp %164 : vector<8x128xf32>
    %cst_48 = arith.constant 1.000000e+00 : f32
    %166 = vector.broadcast %cst_48 : f32 to vector<8x128xf32>
    %167 = arith.addf %166, %165 : vector<8x128xf32>
    %168 = arith.divf %166, %167 : vector<8x128xf32>
    %169 = vector.extract_strided_slice %56 {offsets = [3, 128], sizes = [1, 128], strides = [1, 1]} : vector<8x384xf32> to vector<1x128xf32>
    %170 = vector.extract_strided_slice %159 {offsets = [0, 128], sizes = [8, 128], strides = [1, 1]} : vector<8x384xf32> to vector<8x128xf32>
    %171 = vector.broadcast %169 : vector<1x128xf32> to vector<8x128xf32>
    %172 = arith.addf %171, %170 : vector<8x128xf32>
    %173 = arith.negf %172 : vector<8x128xf32>
    %174 = math.exp %173 : vector<8x128xf32>
    %cst_49 = arith.constant 1.000000e+00 : f32
    %175 = vector.broadcast %cst_49 : f32 to vector<8x128xf32>
    %176 = arith.addf %175, %174 : vector<8x128xf32>
    %177 = arith.divf %175, %176 : vector<8x128xf32>
    %178 = vector.extract_strided_slice %56 {offsets = [3, 256], sizes = [1, 128], strides = [1, 1]} : vector<8x384xf32> to vector<1x128xf32>
    %179 = vector.extract_strided_slice %159 {offsets = [0, 256], sizes = [8, 128], strides = [1, 1]} : vector<8x384xf32> to vector<8x128xf32>
    %180 = arith.addf %179, %57 : vector<8x128xf32>
    %181 = arith.mulf %168, %180 : vector<8x128xf32>
    %182 = vector.broadcast %178 : vector<1x128xf32> to vector<8x128xf32>
    %183 = arith.addf %182, %181 : vector<8x128xf32>
    %184 = math.tanh %183 : vector<8x128xf32>
    %cst_50 = arith.constant 1.000000e+00 : f32
    %185 = vector.broadcast %cst_50 : f32 to vector<8x128xf32>
    %186 = arith.subf %185, %177 : vector<8x128xf32>
    %187 = arith.mulf %186, %184 : vector<8x128xf32>
    %188 = arith.mulf %177, %156 : vector<8x128xf32>
    %189 = arith.addf %187, %188 : vector<8x128xf32>
    %190 = vector.extract_strided_slice %189 {offsets = [0, 0], sizes = [1, 128], strides = [1, 1]} : vector<8x128xf32> to vector<1x128xf32>
    %c0_51 = arith.constant 0 : index
    %c0_52 = arith.constant 0 : index
    %191 = vector.load %arg5[%c0_51, %c0_52] : memref<128x384xf32, #tpu.memory_space<vmem>>, vector<128x384xf32>
    %cst_53 = arith.constant dense<0.000000e+00> : vector<8x384xf32>
    %192 = tpu.matmul %189, %191, %cst_53 {dimension_numbers = #tpu.dot_dimension_numbers<[1], [0], [0], [1], [0, 0, 1, 1], [], []>} : vector<8x128xf32>, vector<128x384xf32>, vector<8x384xf32> -> vector<8x384xf32>
    %193 = vector.extract_strided_slice %56 {offsets = [4, 0], sizes = [1, 128], strides = [1, 1]} : vector<8x384xf32> to vector<1x128xf32>
    %194 = vector.extract_strided_slice %192 {offsets = [0, 0], sizes = [8, 128], strides = [1, 1]} : vector<8x384xf32> to vector<8x128xf32>
    %195 = vector.broadcast %193 : vector<1x128xf32> to vector<8x128xf32>
    %196 = arith.addf %195, %194 : vector<8x128xf32>
    %197 = arith.negf %196 : vector<8x128xf32>
    %198 = math.exp %197 : vector<8x128xf32>
    %cst_54 = arith.constant 1.000000e+00 : f32
    %199 = vector.broadcast %cst_54 : f32 to vector<8x128xf32>
    %200 = arith.addf %199, %198 : vector<8x128xf32>
    %201 = arith.divf %199, %200 : vector<8x128xf32>
    %202 = vector.extract_strided_slice %56 {offsets = [4, 128], sizes = [1, 128], strides = [1, 1]} : vector<8x384xf32> to vector<1x128xf32>
    %203 = vector.extract_strided_slice %192 {offsets = [0, 128], sizes = [8, 128], strides = [1, 1]} : vector<8x384xf32> to vector<8x128xf32>
    %204 = vector.broadcast %202 : vector<1x128xf32> to vector<8x128xf32>
    %205 = arith.addf %204, %203 : vector<8x128xf32>
    %206 = arith.negf %205 : vector<8x128xf32>
    %207 = math.exp %206 : vector<8x128xf32>
    %cst_55 = arith.constant 1.000000e+00 : f32
    %208 = vector.broadcast %cst_55 : f32 to vector<8x128xf32>
    %209 = arith.addf %208, %207 : vector<8x128xf32>
    %210 = arith.divf %208, %209 : vector<8x128xf32>
    %211 = vector.extract_strided_slice %56 {offsets = [4, 256], sizes = [1, 128], strides = [1, 1]} : vector<8x384xf32> to vector<1x128xf32>
    %212 = vector.extract_strided_slice %192 {offsets = [0, 256], sizes = [8, 128], strides = [1, 1]} : vector<8x384xf32> to vector<8x128xf32>
    %213 = arith.addf %212, %57 : vector<8x128xf32>
    %214 = arith.mulf %201, %213 : vector<8x128xf32>
    %215 = vector.broadcast %211 : vector<1x128xf32> to vector<8x128xf32>
    %216 = arith.addf %215, %214 : vector<8x128xf32>
    %217 = math.tanh %216 : vector<8x128xf32>
    %cst_56 = arith.constant 1.000000e+00 : f32
    %218 = vector.broadcast %cst_56 : f32 to vector<8x128xf32>
    %219 = arith.subf %218, %210 : vector<8x128xf32>
    %220 = arith.mulf %219, %217 : vector<8x128xf32>
    %221 = arith.mulf %210, %189 : vector<8x128xf32>
    %222 = arith.addf %220, %221 : vector<8x128xf32>
    %223 = vector.extract_strided_slice %222 {offsets = [0, 0], sizes = [1, 128], strides = [1, 1]} : vector<8x128xf32> to vector<1x128xf32>
    %c0_57 = arith.constant 0 : index
    %c0_58 = arith.constant 0 : index
    %224 = vector.load %arg5[%c0_57, %c0_58] : memref<128x384xf32, #tpu.memory_space<vmem>>, vector<128x384xf32>
    %cst_59 = arith.constant dense<0.000000e+00> : vector<8x384xf32>
    %225 = tpu.matmul %222, %224, %cst_59 {dimension_numbers = #tpu.dot_dimension_numbers<[1], [0], [0], [1], [0, 0, 1, 1], [], []>} : vector<8x128xf32>, vector<128x384xf32>, vector<8x384xf32> -> vector<8x384xf32>
    %226 = vector.extract_strided_slice %56 {offsets = [5, 0], sizes = [1, 128], strides = [1, 1]} : vector<8x384xf32> to vector<1x128xf32>
    %227 = vector.extract_strided_slice %225 {offsets = [0, 0], sizes = [8, 128], strides = [1, 1]} : vector<8x384xf32> to vector<8x128xf32>
    %228 = vector.broadcast %226 : vector<1x128xf32> to vector<8x128xf32>
    %229 = arith.addf %228, %227 : vector<8x128xf32>
    %230 = arith.negf %229 : vector<8x128xf32>
    %231 = math.exp %230 : vector<8x128xf32>
    %cst_60 = arith.constant 1.000000e+00 : f32
    %232 = vector.broadcast %cst_60 : f32 to vector<8x128xf32>
    %233 = arith.addf %232, %231 : vector<8x128xf32>
    %234 = arith.divf %232, %233 : vector<8x128xf32>
    %235 = vector.extract_strided_slice %56 {offsets = [5, 128], sizes = [1, 128], strides = [1, 1]} : vector<8x384xf32> to vector<1x128xf32>
    %236 = vector.extract_strided_slice %225 {offsets = [0, 128], sizes = [8, 128], strides = [1, 1]} : vector<8x384xf32> to vector<8x128xf32>
    %237 = vector.broadcast %235 : vector<1x128xf32> to vector<8x128xf32>
    %238 = arith.addf %237, %236 : vector<8x128xf32>
    %239 = arith.negf %238 : vector<8x128xf32>
    %240 = math.exp %239 : vector<8x128xf32>
    %cst_61 = arith.constant 1.000000e+00 : f32
    %241 = vector.broadcast %cst_61 : f32 to vector<8x128xf32>
    %242 = arith.addf %241, %240 : vector<8x128xf32>
    %243 = arith.divf %241, %242 : vector<8x128xf32>
    %244 = vector.extract_strided_slice %56 {offsets = [5, 256], sizes = [1, 128], strides = [1, 1]} : vector<8x384xf32> to vector<1x128xf32>
    %245 = vector.extract_strided_slice %225 {offsets = [0, 256], sizes = [8, 128], strides = [1, 1]} : vector<8x384xf32> to vector<8x128xf32>
    %246 = arith.addf %245, %57 : vector<8x128xf32>
    %247 = arith.mulf %234, %246 : vector<8x128xf32>
    %248 = vector.broadcast %244 : vector<1x128xf32> to vector<8x128xf32>
    %249 = arith.addf %248, %247 : vector<8x128xf32>
    %250 = math.tanh %249 : vector<8x128xf32>
    %cst_62 = arith.constant 1.000000e+00 : f32
    %251 = vector.broadcast %cst_62 : f32 to vector<8x128xf32>
    %252 = arith.subf %251, %243 : vector<8x128xf32>
    %253 = arith.mulf %252, %250 : vector<8x128xf32>
    %254 = arith.mulf %243, %222 : vector<8x128xf32>
    %255 = arith.addf %253, %254 : vector<8x128xf32>
    %256 = vector.extract_strided_slice %255 {offsets = [0, 0], sizes = [1, 128], strides = [1, 1]} : vector<8x128xf32> to vector<1x128xf32>
    %c0_63 = arith.constant 0 : index
    %c0_64 = arith.constant 0 : index
    %257 = vector.load %arg5[%c0_63, %c0_64] : memref<128x384xf32, #tpu.memory_space<vmem>>, vector<128x384xf32>
    %cst_65 = arith.constant dense<0.000000e+00> : vector<8x384xf32>
    %258 = tpu.matmul %255, %257, %cst_65 {dimension_numbers = #tpu.dot_dimension_numbers<[1], [0], [0], [1], [0, 0, 1, 1], [], []>} : vector<8x128xf32>, vector<128x384xf32>, vector<8x384xf32> -> vector<8x384xf32>
    %259 = vector.extract_strided_slice %56 {offsets = [6, 0], sizes = [1, 128], strides = [1, 1]} : vector<8x384xf32> to vector<1x128xf32>
    %260 = vector.extract_strided_slice %258 {offsets = [0, 0], sizes = [8, 128], strides = [1, 1]} : vector<8x384xf32> to vector<8x128xf32>
    %261 = vector.broadcast %259 : vector<1x128xf32> to vector<8x128xf32>
    %262 = arith.addf %261, %260 : vector<8x128xf32>
    %263 = arith.negf %262 : vector<8x128xf32>
    %264 = math.exp %263 : vector<8x128xf32>
    %cst_66 = arith.constant 1.000000e+00 : f32
    %265 = vector.broadcast %cst_66 : f32 to vector<8x128xf32>
    %266 = arith.addf %265, %264 : vector<8x128xf32>
    %267 = arith.divf %265, %266 : vector<8x128xf32>
    %268 = vector.extract_strided_slice %56 {offsets = [6, 128], sizes = [1, 128], strides = [1, 1]} : vector<8x384xf32> to vector<1x128xf32>
    %269 = vector.extract_strided_slice %258 {offsets = [0, 128], sizes = [8, 128], strides = [1, 1]} : vector<8x384xf32> to vector<8x128xf32>
    %270 = vector.broadcast %268 : vector<1x128xf32> to vector<8x128xf32>
    %271 = arith.addf %270, %269 : vector<8x128xf32>
    %272 = arith.negf %271 : vector<8x128xf32>
    %273 = math.exp %272 : vector<8x128xf32>
    %cst_67 = arith.constant 1.000000e+00 : f32
    %274 = vector.broadcast %cst_67 : f32 to vector<8x128xf32>
    %275 = arith.addf %274, %273 : vector<8x128xf32>
    %276 = arith.divf %274, %275 : vector<8x128xf32>
    %277 = vector.extract_strided_slice %56 {offsets = [6, 256], sizes = [1, 128], strides = [1, 1]} : vector<8x384xf32> to vector<1x128xf32>
    %278 = vector.extract_strided_slice %258 {offsets = [0, 256], sizes = [8, 128], strides = [1, 1]} : vector<8x384xf32> to vector<8x128xf32>
    %279 = arith.addf %278, %57 : vector<8x128xf32>
    %280 = arith.mulf %267, %279 : vector<8x128xf32>
    %281 = vector.broadcast %277 : vector<1x128xf32> to vector<8x128xf32>
    %282 = arith.addf %281, %280 : vector<8x128xf32>
    %283 = math.tanh %282 : vector<8x128xf32>
    %cst_68 = arith.constant 1.000000e+00 : f32
    %284 = vector.broadcast %cst_68 : f32 to vector<8x128xf32>
    %285 = arith.subf %284, %276 : vector<8x128xf32>
    %286 = arith.mulf %285, %283 : vector<8x128xf32>
    %287 = arith.mulf %276, %255 : vector<8x128xf32>
    %288 = arith.addf %286, %287 : vector<8x128xf32>
    %289 = vector.extract_strided_slice %288 {offsets = [0, 0], sizes = [1, 128], strides = [1, 1]} : vector<8x128xf32> to vector<1x128xf32>
    %c0_69 = arith.constant 0 : index
    %c0_70 = arith.constant 0 : index
    %290 = vector.load %arg5[%c0_69, %c0_70] : memref<128x384xf32, #tpu.memory_space<vmem>>, vector<128x384xf32>
    %cst_71 = arith.constant dense<0.000000e+00> : vector<8x384xf32>
    %291 = tpu.matmul %288, %290, %cst_71 {dimension_numbers = #tpu.dot_dimension_numbers<[1], [0], [0], [1], [0, 0, 1, 1], [], []>} : vector<8x128xf32>, vector<128x384xf32>, vector<8x384xf32> -> vector<8x384xf32>
    %292 = vector.extract_strided_slice %56 {offsets = [7, 0], sizes = [1, 128], strides = [1, 1]} : vector<8x384xf32> to vector<1x128xf32>
    %293 = vector.extract_strided_slice %291 {offsets = [0, 0], sizes = [8, 128], strides = [1, 1]} : vector<8x384xf32> to vector<8x128xf32>
    %294 = vector.broadcast %292 : vector<1x128xf32> to vector<8x128xf32>
    %295 = arith.addf %294, %293 : vector<8x128xf32>
    %296 = arith.negf %295 : vector<8x128xf32>
    %297 = math.exp %296 : vector<8x128xf32>
    %cst_72 = arith.constant 1.000000e+00 : f32
    %298 = vector.broadcast %cst_72 : f32 to vector<8x128xf32>
    %299 = arith.addf %298, %297 : vector<8x128xf32>
    %300 = arith.divf %298, %299 : vector<8x128xf32>
    %301 = vector.extract_strided_slice %56 {offsets = [7, 128], sizes = [1, 128], strides = [1, 1]} : vector<8x384xf32> to vector<1x128xf32>
    %302 = vector.extract_strided_slice %291 {offsets = [0, 128], sizes = [8, 128], strides = [1, 1]} : vector<8x384xf32> to vector<8x128xf32>
    %303 = vector.broadcast %301 : vector<1x128xf32> to vector<8x128xf32>
    %304 = arith.addf %303, %302 : vector<8x128xf32>
    %305 = arith.negf %304 : vector<8x128xf32>
    %306 = math.exp %305 : vector<8x128xf32>
    %cst_73 = arith.constant 1.000000e+00 : f32
    %307 = vector.broadcast %cst_73 : f32 to vector<8x128xf32>
    %308 = arith.addf %307, %306 : vector<8x128xf32>
    %309 = arith.divf %307, %308 : vector<8x128xf32>
    %310 = vector.extract_strided_slice %56 {offsets = [7, 256], sizes = [1, 128], strides = [1, 1]} : vector<8x384xf32> to vector<1x128xf32>
    %311 = vector.extract_strided_slice %291 {offsets = [0, 256], sizes = [8, 128], strides = [1, 1]} : vector<8x384xf32> to vector<8x128xf32>
    %312 = arith.addf %311, %57 : vector<8x128xf32>
    %313 = arith.mulf %300, %312 : vector<8x128xf32>
    %314 = vector.broadcast %310 : vector<1x128xf32> to vector<8x128xf32>
    %315 = arith.addf %314, %313 : vector<8x128xf32>
    %316 = math.tanh %315 : vector<8x128xf32>
    %cst_74 = arith.constant 1.000000e+00 : f32
    %317 = vector.broadcast %cst_74 : f32 to vector<8x128xf32>
    %318 = arith.subf %317, %309 : vector<8x128xf32>
    %319 = arith.mulf %318, %316 : vector<8x128xf32>
    %320 = arith.mulf %309, %288 : vector<8x128xf32>
    %321 = arith.addf %319, %320 : vector<8x128xf32>
    %322 = vector.extract_strided_slice %321 {offsets = [0, 0], sizes = [1, 128], strides = [1, 1]} : vector<8x128xf32> to vector<1x128xf32>
    %323 = tpu.concatenate %91, %124, %157, %190, %223, %256, %289, %322 in 0 : vector<1x128xf32>, vector<1x128xf32>, vector<1x128xf32>, vector<1x128xf32>, vector<1x128xf32>, vector<1x128xf32>, vector<1x128xf32>, vector<1x128xf32> -> vector<8x128xf32>
    %c0_75 = arith.constant 0 : index
    %c0_76 = arith.constant 0 : index
    %324 = vector.load %arg8[%c0_75, %c0_76] : memref<8x128xf32, #tpu.memory_space<vmem>>, vector<8x128xf32>
    tpu.vector_store %arg8[%c0_75, %c0_76], %323 {strides = array<i32>} : memref<8x128xf32, #tpu.memory_space<vmem>>, vector<8x128xf32>,
    return
  }
  func.func @transform_0(%arg0: i32, %arg1: memref<8xi32, #tpu.memory_space<smem>>) -> (i32, i32) {
    %c0_i32 = arith.constant 0 : i32
    %c0_i32_0 = arith.constant 0 : i32
    %c0_i32_1 = arith.constant 0 : i32
    return %c0_i32, %c0_i32_0 : i32, i32
  }
  func.func @transform_1(%arg0: i32, %arg1: memref<8xi32, #tpu.memory_space<smem>>) -> (i32, i32) {
    %c0_i32 = arith.constant 0 : i32
    %c0_i32_0 = arith.constant 0 : i32
    %c0_i32_1 = arith.constant 0 : i32
    return %c0_i32, %c0_i32_0 : i32, i32
  }
  func.func @transform_2(%arg0: i32, %arg1: memref<8xi32, #tpu.memory_space<smem>>) -> (i32, i32) {
    %c0_i32 = arith.constant 0 : i32
    %c0_i32_0 = arith.constant 0 : i32
    %c0_i32_1 = arith.constant 0 : i32
    return %c0_i32, %c0_i32_0 : i32, i32
  }
  func.func @transform_3(%arg0: i32, %arg1: memref<8xi32, #tpu.memory_space<smem>>) -> (i32, i32) {
    %c0_i32 = arith.constant 0 : i32
    %c0_i32_0 = arith.constant 0 : i32
    %c0_i32_1 = arith.constant 0 : i32
    return %c0_i32, %c0_i32_0 : i32, i32
  }
  func.func @transform_4(%arg0: i32, %arg1: memref<8xi32, #tpu.memory_space<smem>>) -> (i32, i32) {
    %c0_i32 = arith.constant 0 : i32
    %c0_i32_0 = arith.constant 0 : i32
    %c0_i32_1 = arith.constant 0 : i32
    return %c0_i32, %c0_i32_0 : i32, i32
  }
  func.func @transform_5(%arg0: i32, %arg1: memref<8xi32, #tpu.memory_space<smem>>) -> (i32, i32) {
    %c0_i32 = arith.constant 0 : i32
    %c0_i32_0 = arith.constant 0 : i32
    %c0_i32_1 = arith.constant 0 : i32
    return %c0_i32, %c0_i32_0 : i32, i32
  }
  func.func @transform_6(%arg0: i32, %arg1: memref<8xi32, #tpu.memory_space<smem>>) -> (i32, i32) {
    %c0_i32 = arith.constant 0 : i32
    %c0_i32_0 = arith.constant 0 : i32
    %c0_i32_1 = arith.constant 0 : i32
    return %c0_i32, %c0_i32_0 : i32, i32
  }
}

</mosaic_0001>

<llo_original>
// kernel: encoder_rnn_forward_seq.1
$region0: #{encoder_rnn_forward_seq.1}
  #allocation0 [shape = 'u32[]', space=smem, size = 0x4, offset = 0x4, fixed_abs, tag = 'smem constant byte address 0x4 - core index']
  #allocation1 [shape = 'u32[144,128]{1,0:T(1,128)}', space=vmem, size = 0x12000, scoped, tag = 'internal scratch']
  #allocation2 [shape = 's32[1]{0}', space=sflag, size = 0x4, scoped, tag = 'scoped memory for encoder_rnn_forward_seq.1']
  #allocation3 [shape = 'u8[512]{0}', space=smem, size = 0x200, scoped, tag = 'prefetched SMEM operand 0']
  %s0 = inlined_call_operand.vmem [shape: s32[8], index: 0, kind: input, shape index: {}]
  %s1 = inlined_call_operand.hbm [shape: f32[128,128], index: 1, kind: input, shape index: {}]
  %s2 = inlined_call_operand.vmem [shape: f32[8,128], index: 2, kind: input, shape index: {}]
  %s3 = inlined_call_operand.hbm [shape: f32[128,384], index: 3, kind: input, shape index: {}]
  %s4 = inlined_call_operand.hbm [shape: f32[128,384], index: 4, kind: input, shape index: {}]
  %s5 = inlined_call_operand.vmem [shape: f32[1,384], index: 5, kind: input, shape index: {}]
  %s6 = inlined_call_operand.vmem [shape: f32[8,128], index: 6, kind: input, shape index: {}]
  %s7 = inlined_call_operand.vmem [shape: f32[8,128], index: 7, kind: output, shape index: {}]
  %s8 = sld [smem:[#allocation0]]
  $region46: #{encoder_rnn_forward_seq.1} parent=0
    _
  %s10 = ssub.s32 1, %s8
  %s11 = scalar_select 0, %s10, %s8
  %s12 = sshll.u32 %s0, 4
  %s13 = int_to_ptr.vmem [resolvable:$true] %s12
  %15 = dma.vmem_to_smem %s13, 16, [#allocation3], [#allocation2]
  %16 = dma.done [#allocation2], 16
  %17 = sfence
  $region1: #{encoder_rnn_forward_seq.1} parent=0
    #allocation4 [shape = 'u8[65536]{0}', space=vmem, size = 0x10000, scoped, tag = 'input window, operand 1, single buffered']
    #allocation5 [shape = 's32[1]{0}', space=sflag, size = 0x4, scoped, tag = 'scoped memory for encoder_rnn_forward_seq.1']
    #allocation6 [shape = 'u8[196608]{0}', space=vmem, size = 0x30000, scoped, tag = 'input window, operand 3, single buffered']
    #allocation7 [shape = 's32[1]{0}', space=sflag, size = 0x4, scoped, tag = 'scoped memory for encoder_rnn_forward_seq.1']
    #allocation8 [shape = 'u8[196608]{0}', space=vmem, size = 0x30000, scoped, tag = 'input window, operand 4, single buffered']
    %18 = vsyncpa [#allocation5], 0
    %19 = vsyncpa [#allocation7], 0
    // Predicated region
    $region2: #{encoder_rnn_forward_seq.1} parent=1 // pred_check
      _
    $region3: #{encoder_rnn_forward_seq.1} parent=1 // pred_check_branch
      %21 = sbr.rel (0) target = $region5
    $region4: #{encoder_rnn_forward_seq.1} parent=1 // pred_region
      %s23 = ssub.s32 2048, 2048
      %24 = vsyncadd [#allocation5], %s23
      %s25 = sshll.u32 [#allocation4], 4
      %s26 = int_to_ptr.vmem [resolvable:$true] %s25
      %31 = dma.hbm_to_vmem [thread:$0]  %s1, 2048, %s26, [#allocation5], 128, 128, 8
    $region5: #{encoder_rnn_forward_seq.1} parent=1 // pred_fallthru
      _
    // Predicated region
    $region6: #{encoder_rnn_forward_seq.1} parent=1 // pred_check
      _
    $region7: #{encoder_rnn_forward_seq.1} parent=1 // pred_check_branch
      %33 = sbr.rel (0) target = $region9
    $region8: #{encoder_rnn_forward_seq.1} parent=1 // pred_region
      _
    $region9: #{encoder_rnn_forward_seq.1} parent=1 // pred_fallthru
      _
    // Predicated region
    $region10: #{encoder_rnn_forward_seq.1} parent=1 // pred_check
      _
    $region11: #{encoder_rnn_forward_seq.1} parent=1 // pred_check_branch
      %35 = sbr.rel (0) target = $region13
    $region12: #{encoder_rnn_forward_seq.1} parent=1 // pred_region
      %s37 = ssub.s32 6144, 6144
      %38 = vsyncadd [#allocation7], %s37
      %s39 = sshll.u32 [#allocation6], 4
      %s40 = int_to_ptr.vmem [resolvable:$true] %s39
      %45 = dma.hbm_to_vmem [thread:$0]  %s3, 6144, %s40, [#allocation7], 384, 384, 24
    $region13: #{encoder_rnn_forward_seq.1} parent=1 // pred_fallthru
      _
    // Predicated region
    $region14: #{encoder_rnn_forward_seq.1} parent=1 // pred_check
      _
    $region15: #{encoder_rnn_forward_seq.1} parent=1 // pred_check_branch
      %47 = sbr.rel (0) target = $region17
    $region16: #{encoder_rnn_forward_seq.1} parent=1 // pred_region
      %s49 = ssub.s32 6144, 6144
      %50 = vsyncadd [#allocation7], %s49
      %s51 = sshll.u32 [#allocation8], 4
      %s52 = int_to_ptr.vmem [resolvable:$true] %s51
      %57 = dma.hbm_to_vmem [thread:$0]  %s4, 6144, %s52, [#allocation7], 384, 384, 24
    $region17: #{encoder_rnn_forward_seq.1} parent=1 // pred_fallthru
      _
    // Predicated region
    $region18: #{encoder_rnn_forward_seq.1} parent=1 // pred_check
      _
    $region19: #{encoder_rnn_forward_seq.1} parent=1 // pred_check_branch
      %59 = sbr.rel (0) target = $region21
    $region20: #{encoder_rnn_forward_seq.1} parent=1 // pred_region
      _
    $region21: #{encoder_rnn_forward_seq.1} parent=1 // pred_fallthru
      _
    // Predicated region
    $region22: #{encoder_rnn_forward_seq.1} parent=1 // pred_check
      _
    $region23: #{encoder_rnn_forward_seq.1} parent=1 // pred_check_branch
      %61 = sbr.rel (0) target = $region25
    $region24: #{encoder_rnn_forward_seq.1} parent=1 // pred_region
      _
    $region25: #{encoder_rnn_forward_seq.1} parent=1 // pred_fallthru
      _
    // Predicated region
    $region26: #{encoder_rnn_forward_seq.1} parent=1 // pred_check
      _
    $region27: #{encoder_rnn_forward_seq.1} parent=1 // pred_check_branch
      %63 = sbr.rel (0) target = $region29
    $region28: #{encoder_rnn_forward_seq.1} parent=1 // pred_region
      %64 = dma.done [#allocation5], 2048
    $region29: #{encoder_rnn_forward_seq.1} parent=1 // pred_fallthru
      _
    // Predicated region
    $region30: #{encoder_rnn_forward_seq.1} parent=1 // pred_check
      _
    $region31: #{encoder_rnn_forward_seq.1} parent=1 // pred_check_branch
      %66 = sbr.rel (0) target = $region33
    $region32: #{encoder_rnn_forward_seq.1} parent=1 // pred_region
      %67 = dma.done [#allocation7], 6144
    $region33: #{encoder_rnn_forward_seq.1} parent=1 // pred_fallthru
      _
    // Predicated region
    $region34: #{encoder_rnn_forward_seq.1} parent=1 // pred_check
      _
    $region35: #{encoder_rnn_forward_seq.1} parent=1 // pred_check_branch
      %69 = sbr.rel (0) target = $region37
    $region36: #{encoder_rnn_forward_seq.1} parent=1 // pred_region
      %70 = dma.done [#allocation7], 6144
    $region37: #{encoder_rnn_forward_seq.1} parent=1 // pred_fallthru
      _
    %v71 = vlaneseq
    %v72 = vand.u32 %v71, 127
    %s73 = sld [smem:[#allocation3]]
    %v74 = vstv %s73
    %vm75 = vcmp.eq.s32.totalorder %v72, %v74
    %v76 = vsel %vm75, 1.0, 0.0
    %s77 = sld [smem:[#allocation3 + $0x1]]
    %v78 = vstv %s77
    %vm79 = vcmp.eq.s32.totalorder %v72, %v78
    %v80 = vsel %vm79, 1.0, 0.0
    %s81 = sld [smem:[#allocation3 + $0x2]]
    %v82 = vstv %s81
    %vm83 = vcmp.eq.s32.totalorder %v72, %v82
    %v84 = vsel %vm83, 1.0, 0.0
    %s85 = sld [smem:[#allocation3 + $0x3]]
    %v86 = vstv %s85
    %vm87 = vcmp.eq.s32.totalorder %v72, %v86
    %v88 = vsel %vm87, 1.0, 0.0
    %s89 = sld [smem:[#allocation3 + $0x4]]
    %v90 = vstv %s89
    %vm91 = vcmp.eq.s32.totalorder %v72, %v90
    %v92 = vsel %vm91, 1.0, 0.0
    %s93 = sld [smem:[#allocation3 + $0x5]]
    %v94 = vstv %s93
    %vm95 = vcmp.eq.s32.totalorder %v72, %v94
    %v96 = vsel %vm95, 1.0, 0.0
    %s97 = sld [smem:[#allocation3 + $0x6]]
    %v98 = vstv %s97
    %vm99 = vcmp.eq.s32.totalorder %v72, %v98
    %v100 = vsel %vm99, 1.0, 0.0
    %s101 = sld [smem:[#allocation3 + $0x7]]
    %v102 = vstv %s101
    %vm103 = vcmp.eq.s32.totalorder %v72, %v102
    %v104 = vsel %vm103, 1.0, 0.0
    %vm105 = vcmask 1040384
    %v106 = vsel %vm105, %v76, %v80
    %vm107 = vcmask 1041408
    %v108 = vsel %vm107, %v106, %v84
    %vm109 = vcmask 1042432
    %v110 = vsel %vm109, %v108, %v88
    %vm111 = vcmask 1043456
    %v112 = vsel %vm111, %v110, %v92
    %vm113 = vcmask 1044480
    %v114 = vsel %vm113, %v112, %v96
    %vm115 = vcmask 1045504
    %v116 = vsel %vm115, %v114, %v100
    %vm117 = vcmask 1046528
    %v118 = vsel %vm117, %v116, %v104
    %v119 = vld [vmem:[#allocation4] sm:$0xff]
    %v120 = vld [vmem:[#allocation4 + $0x8] sm:$0xff]
    %v121 = vld [vmem:[#allocation4 + $0x10] sm:$0xff]
    %v122 = vld [vmem:[#allocation4 + $0x18] sm:$0xff]
    %v123 = vld [vmem:[#allocation4 + $0x20] sm:$0xff]
    %v124 = vld [vmem:[#allocation4 + $0x28] sm:$0xff]
    %v125 = vld [vmem:[#allocation4 + $0x30] sm:$0xff]
    %v126 = vld [vmem:[#allocation4 + $0x38] sm:$0xff]
    %v127 = vld [vmem:[#allocation4 + $0x40] sm:$0xff]
    %v128 = vld [vmem:[#allocation4 + $0x48] sm:$0xff]
    %v129 = vld [vmem:[#allocation4 + $0x50] sm:$0xff]
    %v130 = vld [vmem:[#allocation4 + $0x58] sm:$0xff]
    %v131 = vld [vmem:[#allocation4 + $0x60] sm:$0xff]
    %v132 = vld [vmem:[#allocation4 + $0x68] sm:$0xff]
    %v133 = vld [vmem:[#allocation4 + $0x70] sm:$0xff]
    %v134 = vld [vmem:[#allocation4 + $0x78] sm:$0xff]
    %135 = vmatprep.subr.mxu0 0.0
    %136 = vmatpush1.msra.mxu0 %v134
    %137 = vmatprep.subr.mxu0 0.0
    %138 = vmatpush1.msra.mxu0 %v133
    %139 = vmatprep.subr.mxu0 0.0
    %140 = vmatpush1.msra.mxu0 %v132
    %141 = vmatprep.subr.mxu0 0.0
    %142 = vmatpush1.msra.mxu0 %v131
    %143 = vmatprep.subr.mxu0 0.0
    %144 = vmatpush1.msra.mxu0 %v130
    %145 = vmatprep.subr.mxu0 0.0
    %146 = vmatpush1.msra.mxu0 %v129
    %147 = vmatprep.subr.mxu0 0.0
    %148 = vmatpush1.msra.mxu0 %v128
    %149 = vmatprep.subr.mxu0 0.0
    %150 = vmatpush1.msra.mxu0 %v127
    %151 = vmatprep.subr.mxu0 0.0
    %152 = vmatpush1.msra.mxu0 %v126
    %153 = vmatprep.subr.mxu0 0.0
    %154 = vmatpush1.msra.mxu0 %v125
    %155 = vmatprep.subr.mxu0 0.0
    %156 = vmatpush1.msra.mxu0 %v124
    %157 = vmatprep.subr.mxu0 0.0
    %158 = vmatpush1.msra.mxu0 %v123
    %159 = vmatprep.subr.mxu0 0.0
    %160 = vmatpush1.msra.mxu0 %v122
    %161 = vmatprep.subr.mxu0 0.0
    %162 = vmatpush1.msra.mxu0 %v121
    %163 = vmatprep.subr.mxu0 0.0
    %164 = vmatpush1.msra.mxu0 %v120
    %165 = vmatprep.subr.mxu0 0.0
    %166 = vmatpush1.msra.mxu0 %v119
    %167 = vmatprep.subr.mxu0 0.0
    %168 = vmatpush2.msra.mxu0 0.0
    %169 = vmatprep.subr.mxu0 0.0
    %170 = vmatpush2.msra.mxu0 0.0
    %171 = vmatprep.subr.mxu0 0.0
    %172 = vmatpush2.msra.mxu0 0.0
    %173 = vmatprep.subr.mxu0 0.0
    %174 = vmatpush2.msra.mxu0 0.0
    %175 = vmatprep.subr.mxu0 0.0
    %176 = vmatpush2.msra.mxu0 0.0
    %177 = vmatprep.subr.mxu0 0.0
    %178 = vmatpush2.msra.mxu0 0.0
    %179 = vmatprep.subr.mxu0 0.0
    %180 = vmatpush2.msra.mxu0 0.0
    %181 = vmatprep.subr.mxu0 0.0
    %182 = vmatpush2.msra.mxu0 0.0
    %183 = vmatprep.subr.mxu0 0.0
    %184 = vmatpush2.msra.mxu0 0.0
    %185 = vmatprep.subr.mxu0 0.0
    %186 = vmatpush2.msra.mxu0 0.0
    %187 = vmatprep.subr.mxu0 0.0
    %188 = vmatpush2.msra.mxu0 0.0
    %189 = vmatprep.subr.mxu0 0.0
    %190 = vmatpush2.msra.mxu0 0.0
    %191 = vmatprep.subr.mxu0 0.0
    %192 = vmatpush2.msra.mxu0 0.0
    %193 = vmatprep.subr.mxu0 0.0
    %194 = vmatpush2.msra.mxu0 0.0
    %195 = vmatprep.subr.mxu0 0.0
    %196 = vmatpush2.msra.mxu0 0.0
    %197 = vmatprep.subr.mxu0 0.0
    %198 = vmatpush2.msra.mxu0 0.0
    %199 = vmatprep.mubr.f32.mxu0 0.0
    %200 = vmatmul.mubr.f32.gmra.mxu0 %v118
    %v201 = vpop.f32.mrf.mxu0
    %v202 = vadd.f32 0.0, %v201
    %v203 = vpop.f32.mrf.mxu0
    %204 = vdwg.mxu0
    %v205 = vld [vmem:[#allocation6] sm:$0xff]
    %v206 = vld [vmem:[#allocation6 + $0x8] sm:$0xff]
    %v207 = vld [vmem:[#allocation6 + $0x10] sm:$0xff]
    %v208 = vld [vmem:[#allocation6 + $0x18] sm:$0xff]
    %v209 = vld [vmem:[#allocation6 + $0x20] sm:$0xff]
    %v210 = vld [vmem:[#allocation6 + $0x28] sm:$0xff]
    %v211 = vld [vmem:[#allocation6 + $0x30] sm:$0xff]
    %v212 = vld [vmem:[#allocation6 + $0x38] sm:$0xff]
    %v213 = vld [vmem:[#allocation6 + $0x40] sm:$0xff]
    %v214 = vld [vmem:[#allocation6 + $0x48] sm:$0xff]
    %v215 = vld [vmem:[#allocation6 + $0x50] sm:$0xff]
    %v216 = vld [vmem:[#allocation6 + $0x58] sm:$0xff]
    %v217 = vld [vmem:[#allocation6 + $0x60] sm:$0xff]
    %v218 = vld [vmem:[#allocation6 + $0x68] sm:$0xff]
    %v219 = vld [vmem:[#allocation6 + $0x70] sm:$0xff]
    %v220 = vld [vmem:[#allocation6 + $0x78] sm:$0xff]
    %v221 = vld [vmem:[#allocation6 + $0x80] sm:$0xff]
    %v222 = vld [vmem:[#allocation6 + $0x88] sm:$0xff]
    %v223 = vld [vmem:[#allocation6 + $0x90] sm:$0xff]
    %v224 = vld [vmem:[#allocation6 + $0x98] sm:$0xff]
    %v225 = vld [vmem:[#allocation6 + $0xa0] sm:$0xff]
    %v226 = vld [vmem:[#allocation6 + $0xa8] sm:$0xff]
    %v227 = vld [vmem:[#allocation6 + $0xb0] sm:$0xff]
    %v228 = vld [vmem:[#allocation6 + $0xb8] sm:$0xff]
    %v229 = vld [vmem:[#allocation6 + $0xc0] sm:$0xff]
    %v230 = vld [vmem:[#allocation6 + $0xc8] sm:$0xff]
    %v231 = vld [vmem:[#allocation6 + $0xd0] sm:$0xff]
    %v232 = vld [vmem:[#allocation6 + $0xd8] sm:$0xff]
    %v233 = vld [vmem:[#allocation6 + $0xe0] sm:$0xff]
    %v234 = vld [vmem:[#allocation6 + $0xe8] sm:$0xff]
    %v235 = vld [vmem:[#allocation6 + $0xf0] sm:$0xff]
    %v236 = vld [vmem:[#allocation6 + $0xf8] sm:$0xff]
    %v237 = vld [vmem:[#allocation6 + $0x100] sm:$0xff]
    %v238 = vld [vmem:[#allocation6 + $0x108] sm:$0xff]
    %v239 = vld [vmem:[#allocation6 + $0x110] sm:$0xff]
    %v240 = vld [vmem:[#allocation6 + $0x118] sm:$0xff]
    %v241 = vld [vmem:[#allocation6 + $0x120] sm:$0xff]
    %v242 = vld [vmem:[#allocation6 + $0x128] sm:$0xff]
    %v243 = vld [vmem:[#allocation6 + $0x130] sm:$0xff]
    %v244 = vld [vmem:[#allocation6 + $0x138] sm:$0xff]
    %v245 = vld [vmem:[#allocation6 + $0x140] sm:$0xff]
    %v246 = vld [vmem:[#allocation6 + $0x148] sm:$0xff]
    %v247 = vld [vmem:[#allocation6 + $0x150] sm:$0xff]
    %v248 = vld [vmem:[#allocation6 + $0x158] sm:$0xff]
    %v249 = vld [vmem:[#allocation6 + $0x160] sm:$0xff]
    %v250 = vld [vmem:[#allocation6 + $0x168] sm:$0xff]
    %v251 = vld [vmem:[#allocation6 + $0x170] sm:$0xff]
    %v252 = vld [vmem:[#allocation6 + $0x178] sm:$0xff]
    %v253 = vld [vmem:[%s5] sm:$0x7]
    %v255 = vlaneseq
    %v256 = vshrl.u32 %v255, 7
    %v257 = vsub.s32 0, %v256
    %v258 = vrot.slane %v253, %v257
    %v259 = vlaneseq
    %v260 = vshrl.u32 %v259, 7
    %v261 = vsub.s32 1, %v260
    %v262 = vrot.slane %v253, %v261
    %v263 = vlaneseq
    %v264 = vshrl.u32 %v263, 7
    %v265 = vsub.s32 2, %v264
    %v266 = vrot.slane %v253, %v265
    %270 = vmatprep.subr.mxu0 %v251
    %271 = vmatpush1.msra.mxu0 %v250
    %272 = vmatprep.subr.mxu0 %v248
    %273 = vmatpush1.msra.mxu0 %v247
    %274 = vmatprep.subr.mxu0 %v245
    %275 = vmatpush1.msra.mxu0 %v244
    %276 = vmatprep.subr.mxu0 %v242
    %277 = vmatpush1.msra.mxu0 %v241
    %278 = vmatprep.subr.mxu0 %v239
    %279 = vmatpush1.msra.mxu0 %v238
    %280 = vmatprep.subr.mxu0 %v236
    %281 = vmatpush1.msra.mxu0 %v235
    %282 = vmatprep.subr.mxu0 %v233
    %283 = vmatpush1.msra.mxu0 %v232
    %284 = vmatprep.subr.mxu0 %v230
    %285 = vmatpush1.msra.mxu0 %v229
    %286 = vmatprep.subr.mxu0 %v227
    %287 = vmatpush1.msra.mxu0 %v226
    %288 = vmatprep.subr.mxu0 %v224
    %289 = vmatpush1.msra.mxu0 %v223
    %290 = vmatprep.subr.mxu0 %v221
    %291 = vmatpush1.msra.mxu0 %v220
    %292 = vmatprep.subr.mxu0 %v218
    %293 = vmatpush1.msra.mxu0 %v217
    %294 = vmatprep.subr.mxu0 %v215
    %295 = vmatpush1.msra.mxu0 %v214
    %296 = vmatprep.subr.mxu0 %v212
    %297 = vmatpush1.msra.mxu0 %v211
    %298 = vmatprep.subr.mxu0 %v209
    %299 = vmatpush1.msra.mxu0 %v208
    %300 = vmatprep.subr.mxu0 %v206
    %301 = vmatpush1.msra.mxu0 %v205
    %302 = vmatprep.subr.mxu0 0.0
    %303 = vmatpush2.msra.mxu0 0.0
    %304 = vmatprep.subr.mxu0 0.0
    %305 = vmatpush2.msra.mxu0 0.0
    %306 = vmatprep.subr.mxu0 0.0
    %307 = vmatpush2.msra.mxu0 0.0
    %308 = vmatprep.subr.mxu0 0.0
    %309 = vmatpush2.msra.mxu0 0.0
    %310 = vmatprep.subr.mxu0 0.0
    %311 = vmatpush2.msra.mxu0 0.0
    %312 = vmatprep.subr.mxu0 0.0
    %313 = vmatpush2.msra.mxu0 0.0
    %314 = vmatprep.subr.mxu0 0.0
    %315 = vmatpush2.msra.mxu0 0.0
    %316 = vmatprep.subr.mxu0 0.0
    %317 = vmatpush2.msra.mxu0 0.0
    %318 = vmatprep.subr.mxu0 0.0
    %319 = vmatpush2.msra.mxu0 0.0
    %320 = vmatprep.subr.mxu0 0.0
    %321 = vmatpush2.msra.mxu0 0.0
    %322 = vmatprep.subr.mxu0 0.0
    %323 = vmatpush2.msra.mxu0 0.0
    %324 = vmatprep.subr.mxu0 0.0
    %325 = vmatpush2.msra.mxu0 0.0
    %326 = vmatprep.subr.mxu0 0.0
    %327 = vmatpush2.msra.mxu0 0.0
    %328 = vmatprep.subr.mxu0 0.0
    %329 = vmatpush2.msra.mxu0 0.0
    %330 = vmatprep.subr.mxu0 0.0
    %331 = vmatpush2.msra.mxu0 0.0
    %332 = vmatprep.subr.mxu0 0.0
    %333 = vmatpush2.msra.mxu0 0.0
    %334 = vmatprep.mubr.f32.mxu0 0.0
    %335 = vmatmul.mubr.f32.gmra.mxu0 %v202
    %v336 = vpop.f32.mrf.mxu0
    %v337 = vadd.f32 %v258, %v336
    %v338 = vpop.f32.mrf.mxu0
    %v339 = vadd.f32 %v262, %v338
    %340 = vdwg.mxu0
    %341 = vmatprep.subr.mxu0 0.0
    %342 = vmatpush1.msra.mxu0 %v252
    %343 = vmatprep.subr.mxu0 0.0
    %344 = vmatpush1.msra.mxu0 %v249
    %345 = vmatprep.subr.mxu0 0.0
    %346 = vmatpush1.msra.mxu0 %v246
    %347 = vmatprep.subr.mxu0 0.0
    %348 = vmatpush1.msra.mxu0 %v243
    %349 = vmatprep.subr.mxu0 0.0
    %350 = vmatpush1.msra.mxu0 %v240
    %351 = vmatprep.subr.mxu0 0.0
    %352 = vmatpush1.msra.mxu0 %v237
    %353 = vmatprep.subr.mxu0 0.0
    %354 = vmatpush1.msra.mxu0 %v234
    %355 = vmatprep.subr.mxu0 0.0
    %356 = vmatpush1.msra.mxu0 %v231
    %357 = vmatprep.subr.mxu0 0.0
    %358 = vmatpush1.msra.mxu0 %v228
    %359 = vmatprep.subr.mxu0 0.0
    %360 = vmatpush1.msra.mxu0 %v225
    %361 = vmatprep.subr.mxu0 0.0
    %362 = vmatpush1.msra.mxu0 %v222
    %363 = vmatprep.subr.mxu0 0.0
    %364 = vmatpush1.msra.mxu0 %v219
    %365 = vmatprep.subr.mxu0 0.0
    %366 = vmatpush1.msra.mxu0 %v216
    %367 = vmatprep.subr.mxu0 0.0
    %368 = vmatpush1.msra.mxu0 %v213
    %369 = vmatprep.subr.mxu0 0.0
    %370 = vmatpush1.msra.mxu0 %v210
    %371 = vmatprep.subr.mxu0 0.0
    %372 = vmatpush1.msra.mxu0 %v207
    %373 = vmatprep.subr.mxu0 0.0
    %374 = vmatpush2.msra.mxu0 0.0
    %375 = vmatprep.subr.mxu0 0.0
    %376 = vmatpush2.msra.mxu0 0.0
    %377 = vmatprep.subr.mxu0 0.0
    %378 = vmatpush2.msra.mxu0 0.0
    %379 = vmatprep.subr.mxu0 0.0
    %380 = vmatpush2.msra.mxu0 0.0
    %381 = vmatprep.subr.mxu0 0.0
    %382 = vmatpush2.msra.mxu0 0.0
    %383 = vmatprep.subr.mxu0 0.0
    %384 = vmatpush2.msra.mxu0 0.0
    %385 = vmatprep.subr.mxu0 0.0
    %386 = vmatpush2.msra.mxu0 0.0
    %387 = vmatprep.subr.mxu0 0.0
    %388 = vmatpush2.msra.mxu0 0.0
    %389 = vmatprep.subr.mxu0 0.0
    %390 = vmatpush2.msra.mxu0 0.0
    %391 = vmatprep.subr.mxu0 0.0
    %392 = vmatpush2.msra.mxu0 0.0
    %393 = vmatprep.subr.mxu0 0.0
    %394 = vmatpush2.msra.mxu0 0.0
    %395 = vmatprep.subr.mxu0 0.0
    %396 = vmatpush2.msra.mxu0 0.0
    %397 = vmatprep.subr.mxu0 0.0
    %398 = vmatpush2.msra.mxu0 0.0
    %399 = vmatprep.subr.mxu0 0.0
    %400 = vmatpush2.msra.mxu0 0.0
    %401 = vmatprep.subr.mxu0 0.0
    %402 = vmatpush2.msra.mxu0 0.0
    %403 = vmatprep.subr.mxu0 0.0
    %404 = vmatpush2.msra.mxu0 0.0
    %405 = vmatprep.mubr.f32.mxu0 0.0
    %406 = vmatmul.mubr.f32.gmra.mxu0 %v202
    %v407 = vpop.f32.mrf.mxu0
    %v408 = vadd.f32 %v266, %v407
    %v409 = vpop.f32.mrf.mxu0
    %410 = vdwg.mxu0
    %v411 = vld [vmem:[%s6] sm:$0xff]
    %v412 = vld [vmem:[%s2] sm:$0xff]
    %v413 = vld [vmem:[#allocation8] sm:$0xff]
    %v414 = vld [vmem:[#allocation8 + $0x8] sm:$0xff]
    %v415 = vld [vmem:[#allocation8 + $0x10] sm:$0xff]
    %v416 = vld [vmem:[#allocation8 + $0x18] sm:$0xff]
    %v417 = vld [vmem:[#allocation8 + $0x20] sm:$0xff]
    %v418 = vld [vmem:[#allocation8 + $0x28] sm:$0xff]
    %v419 = vld [vmem:[#allocation8 + $0x30] sm:$0xff]
    %v420 = vld [vmem:[#allocation8 + $0x38] sm:$0xff]
    %v421 = vld [vmem:[#allocation8 + $0x40] sm:$0xff]
    %v422 = vld [vmem:[#allocation8 + $0x48] sm:$0xff]
    %v423 = vld [vmem:[#allocation8 + $0x50] sm:$0xff]
    %v424 = vld [vmem:[#allocation8 + $0x58] sm:$0xff]
    %v425 = vld [vmem:[#allocation8 + $0x60] sm:$0xff]
    %v426 = vld [vmem:[#allocation8 + $0x68] sm:$0xff]
    %v427 = vld [vmem:[#allocation8 + $0x70] sm:$0xff]
    %v428 = vld [vmem:[#allocation8 + $0x78] sm:$0xff]
    %v429 = vld [vmem:[#allocation8 + $0x80] sm:$0xff]
    %v430 = vld [vmem:[#allocation8 + $0x88] sm:$0xff]
    %v431 = vld [vmem:[#allocation8 + $0x90] sm:$0xff]
    %v432 = vld [vmem:[#allocation8 + $0x98] sm:$0xff]
    %v433 = vld [vmem:[#allocation8 + $0xa0] sm:$0xff]
    %v434 = vld [vmem:[#allocation8 + $0xa8] sm:$0xff]
    %v435 = vld [vmem:[#allocation8 + $0xb0] sm:$0xff]
    %v436 = vld [vmem:[#allocation8 + $0xb8] sm:$0xff]
    %v437 = vld [vmem:[#allocation8 + $0xc0] sm:$0xff]
    %v438 = vld [vmem:[#allocation8 + $0xc8] sm:$0xff]
    %v439 = vld [vmem:[#allocation8 + $0xd0] sm:$0xff]
    %v440 = vld [vmem:[#allocation8 + $0xd8] sm:$0xff]
    %v441 = vld [vmem:[#allocation8 + $0xe0] sm:$0xff]
    %v442 = vld [vmem:[#allocation8 + $0xe8] sm:$0xff]
    %v443 = vld [vmem:[#allocation8 + $0xf0] sm:$0xff]
    %v444 = vld [vmem:[#allocation8 + $0xf8] sm:$0xff]
    %v445 = vld [vmem:[#allocation8 + $0x100] sm:$0xff]
    %v446 = vld [vmem:[#allocation8 + $0x108] sm:$0xff]
    %v447 = vld [vmem:[#allocation8 + $0x110] sm:$0xff]
    %v448 = vld [vmem:[#allocation8 + $0x118] sm:$0xff]
    %v449 = vld [vmem:[#allocation8 + $0x120] sm:$0xff]
    %v450 = vld [vmem:[#allocation8 + $0x128] sm:$0xff]
    %v451 = vld [vmem:[#allocation8 + $0x130] sm:$0xff]
    %v452 = vld [vmem:[#allocation8 + $0x138] sm:$0xff]
    %v453 = vld [vmem:[#allocation8 + $0x140] sm:$0xff]
    %v454 = vld [vmem:[#allocation8 + $0x148] sm:$0xff]
    %v455 = vld [vmem:[#allocation8 + $0x150] sm:$0xff]
    %v456 = vld [vmem:[#allocation8 + $0x158] sm:$0xff]
    %v457 = vld [vmem:[#allocation8 + $0x160] sm:$0xff]
    %v458 = vld [vmem:[#allocation8 + $0x168] sm:$0xff]
    %v459 = vld [vmem:[#allocation8 + $0x170] sm:$0xff]
    %v460 = vld [vmem:[#allocation8 + $0x178] sm:$0xff]
    %461 = vmatprep.subr.mxu0 %v459
    %462 = vmatpush1.msra.mxu0 %v458
    %463 = vmatprep.subr.mxu0 %v456
    %464 = vmatpush1.msra.mxu0 %v455
    %465 = vmatprep.subr.mxu0 %v453
    %466 = vmatpush1.msra.mxu0 %v452
    %467 = vmatprep.subr.mxu0 %v450
    %468 = vmatpush1.msra.mxu0 %v449
    %469 = vmatprep.subr.mxu0 %v447
    %470 = vmatpush1.msra.mxu0 %v446
    %471 = vmatprep.subr.mxu0 %v444
    %472 = vmatpush1.msra.mxu0 %v443
    %473 = vmatprep.subr.mxu0 %v441
    %474 = vmatpush1.msra.mxu0 %v440
    %475 = vmatprep.subr.mxu0 %v438
    %476 = vmatpush1.msra.mxu0 %v437
    %477 = vmatprep.subr.mxu0 %v435
    %478 = vmatpush1.msra.mxu0 %v434
    %479 = vmatprep.subr.mxu0 %v432
    %480 = vmatpush1.msra.mxu0 %v431
    %481 = vmatprep.subr.mxu0 %v429
    %482 = vmatpush1.msra.mxu0 %v428
    %483 = vmatprep.subr.mxu0 %v426
    %484 = vmatpush1.msra.mxu0 %v425
    %485 = vmatprep.subr.mxu0 %v423
    %486 = vmatpush1.msra.mxu0 %v422
    %487 = vmatprep.subr.mxu0 %v420
    %488 = vmatpush1.msra.mxu0 %v419
    %489 = vmatprep.subr.mxu0 %v417
    %490 = vmatpush1.msra.mxu0 %v416
    %491 = vmatprep.subr.mxu0 %v414
    %492 = vmatpush1.msra.mxu0 %v413
    %493 = vmatprep.subr.mxu0 0.0
    %494 = vmatpush2.msra.mxu0 0.0
    %495 = vmatprep.subr.mxu0 0.0
    %496 = vmatpush2.msra.mxu0 0.0
    %497 = vmatprep.subr.mxu0 0.0
    %498 = vmatpush2.msra.mxu0 0.0
    %499 = vmatprep.subr.mxu0 0.0
    %500 = vmatpush2.msra.mxu0 0.0
    %501 = vmatprep.subr.mxu0 0.0
    %502 = vmatpush2.msra.mxu0 0.0
    %503 = vmatprep.subr.mxu0 0.0
    %504 = vmatpush2.msra.mxu0 0.0
    %505 = vmatprep.subr.mxu0 0.0
    %506 = vmatpush2.msra.mxu0 0.0
    %507 = vmatprep.subr.mxu0 0.0
    %508 = vmatpush2.msra.mxu0 0.0
    %509 = vmatprep.subr.mxu0 0.0
    %510 = vmatpush2.msra.mxu0 0.0
    %511 = vmatprep.subr.mxu0 0.0
    %512 = vmatpush2.msra.mxu0 0.0
    %513 = vmatprep.subr.mxu0 0.0
    %514 = vmatpush2.msra.mxu0 0.0
    %515 = vmatprep.subr.mxu0 0.0
    %516 = vmatpush2.msra.mxu0 0.0
    %517 = vmatprep.subr.mxu0 0.0
    %518 = vmatpush2.msra.mxu0 0.0
    %519 = vmatprep.subr.mxu0 0.0
    %520 = vmatpush2.msra.mxu0 0.0
    %521 = vmatprep.subr.mxu0 0.0
    %522 = vmatpush2.msra.mxu0 0.0
    %523 = vmatprep.subr.mxu0 0.0
    %524 = vmatpush2.msra.mxu0 0.0
    %525 = vmatprep.mubr.f32.mxu0 0.0
    %526 = vmatmul.mubr.f32.gmra.mxu0 %v412
    %v527 = vpop.f32.mrf.mxu0
    %v528 = vadd.f32 0.0, %v527
    %v529 = vpop.f32.mrf.mxu0
    %v530 = vadd.f32 0.0, %v529
    %531 = vdwg.mxu0
    %532 = vmatprep.subr.mxu0 0.0
    %533 = vmatpush1.msra.mxu0 %v460
    %534 = vmatprep.subr.mxu0 0.0
    %535 = vmatpush1.msra.mxu0 %v457
    %536 = vmatprep.subr.mxu0 0.0
    %537 = vmatpush1.msra.mxu0 %v454
    %538 = vmatprep.subr.mxu0 0.0
    %539 = vmatpush1.msra.mxu0 %v451
    %540 = vmatprep.subr.mxu0 0.0
    %541 = vmatpush1.msra.mxu0 %v448
    %542 = vmatprep.subr.mxu0 0.0
    %543 = vmatpush1.msra.mxu0 %v445
    %544 = vmatprep.subr.mxu0 0.0
    %545 = vmatpush1.msra.mxu0 %v442
    %546 = vmatprep.subr.mxu0 0.0
    %547 = vmatpush1.msra.mxu0 %v439
    %548 = vmatprep.subr.mxu0 0.0
    %549 = vmatpush1.msra.mxu0 %v436
    %550 = vmatprep.subr.mxu0 0.0
    %551 = vmatpush1.msra.mxu0 %v433
    %552 = vmatprep.subr.mxu0 0.0
    %553 = vmatpush1.msra.mxu0 %v430
    %554 = vmatprep.subr.mxu0 0.0
    %555 = vmatpush1.msra.mxu0 %v427
    %556 = vmatprep.subr.mxu0 0.0
    %557 = vmatpush1.msra.mxu0 %v424
    %558 = vmatprep.subr.mxu0 0.0
    %559 = vmatpush1.msra.mxu0 %v421
    %560 = vmatprep.subr.mxu0 0.0
    %561 = vmatpush1.msra.mxu0 %v418
    %562 = vmatprep.subr.mxu0 0.0
    %563 = vmatpush1.msra.mxu0 %v415
    %564 = vmatprep.subr.mxu0 0.0
    %565 = vmatpush2.msra.mxu0 0.0
    %566 = vmatprep.subr.mxu0 0.0
    %567 = vmatpush2.msra.mxu0 0.0
    %568 = vmatprep.subr.mxu0 0.0
    %569 = vmatpush2.msra.mxu0 0.0
    %570 = vmatprep.subr.mxu0 0.0
    %571 = vmatpush2.msra.mxu0 0.0
    %572 = vmatprep.subr.mxu0 0.0
    %573 = vmatpush2.msra.mxu0 0.0
    %574 = vmatprep.subr.mxu0 0.0
    %575 = vmatpush2.msra.mxu0 0.0
    %576 = vmatprep.subr.mxu0 0.0
    %577 = vmatpush2.msra.mxu0 0.0
    %578 = vmatprep.subr.mxu0 0.0
    %579 = vmatpush2.msra.mxu0 0.0
    %580 = vmatprep.subr.mxu0 0.0
    %581 = vmatpush2.msra.mxu0 0.0
    %582 = vmatprep.subr.mxu0 0.0
    %583 = vmatpush2.msra.mxu0 0.0
    %584 = vmatprep.subr.mxu0 0.0
    %585 = vmatpush2.msra.mxu0 0.0
    %586 = vmatprep.subr.mxu0 0.0
    %587 = vmatpush2.msra.mxu0 0.0
    %588 = vmatprep.subr.mxu0 0.0
    %589 = vmatpush2.msra.mxu0 0.0
    %590 = vmatprep.subr.mxu0 0.0
    %591 = vmatpush2.msra.mxu0 0.0
    %592 = vmatprep.subr.mxu0 0.0
    %593 = vmatpush2.msra.mxu0 0.0
    %594 = vmatprep.subr.mxu0 0.0
    %595 = vmatpush2.msra.mxu0 0.0
    %596 = vmatprep.mubr.f32.mxu0 0.0
    %597 = vmatmul.mubr.f32.gmra.mxu0 %v412
    %v598 = vpop.f32.mrf.mxu0
    %v599 = vadd.f32 0.0, %v598
    %v600 = vpop.f32.mrf.mxu0
    %601 = vdwg.mxu0
    %v602 = vlaneseq
    %v603 = vshrl.u32 %v602, 7
    %v604 = vsub.s32 0, %v603
    %v605 = vrot.slane %v337, %v604
    %v606 = vadd.f32 %v605, %v528
    %v607 = vxor.u32 %v606, 2147483648
    %v608 = vmul.f32 %v607, 1.442695
    %v609 = vpow.pop %v608
    %v610 = vadd.f32 %v609, 1.0
    %v611 = vrcp.pop %v610
    %v612 = vmul.f32 1.0, %v611
    %v613 = vlaneseq
    %v614 = vshrl.u32 %v613, 7
    %v615 = vsub.s32 0, %v614
    %v616 = vrot.slane %v339, %v615
    %v617 = vadd.f32 %v616, %v530
    %v618 = vxor.u32 %v617, 2147483648
    %v619 = vmul.f32 %v618, 1.442695
    %v620 = vpow.pop %v619
    %v621 = vadd.f32 %v620, 1.0
    %v622 = vrcp.pop %v621
    %v623 = vmul.f32 1.0, %v622
    %v624 = vadd.f32 %v599, %v411
    %v625 = vmul.f32 %v612, %v624
    %v626 = vlaneseq
    %v627 = vshrl.u32 %v626, 7
    %v628 = vsub.s32 0, %v627
    %v629 = vrot.slane %v408, %v628
    %v630 = vadd.f32 %v629, %v625
    %v631 = vtanh.pop %v630
    %v632 = vsub.f32 1.0, %v623
    %v633 = vmul.f32 %v632, %v631
    %v634 = vmul.f32 %v623, %v412
    %v635 = vadd.f32 %v633, %v634
    %636 = vmatprep.subr.mxu0 %v459
    %637 = vmatpush1.msra.mxu0 %v458
    %638 = vmatprep.subr.mxu0 %v456
    %639 = vmatpush1.msra.mxu0 %v455
    %640 = vmatprep.subr.mxu0 %v453
    %641 = vmatpush1.msra.mxu0 %v452
    %642 = vmatprep.subr.mxu0 %v450
    %643 = vmatpush1.msra.mxu0 %v449
    %644 = vmatprep.subr.mxu0 %v447
    %645 = vmatpush1.msra.mxu0 %v446
    %646 = vmatprep.subr.mxu0 %v444
    %647 = vmatpush1.msra.mxu0 %v443
    %648 = vmatprep.subr.mxu0 %v441
    %649 = vmatpush1.msra.mxu0 %v440
    %650 = vmatprep.subr.mxu0 %v438
    %651 = vmatpush1.msra.mxu0 %v437
    %652 = vmatprep.subr.mxu0 %v435
    %653 = vmatpush1.msra.mxu0 %v434
    %654 = vmatprep.subr.mxu0 %v432
    %655 = vmatpush1.msra.mxu0 %v431
    %656 = vmatprep.subr.mxu0 %v429
    %657 = vmatpush1.msra.mxu0 %v428
    %658 = vmatprep.subr.mxu0 %v426
    %659 = vmatpush1.msra.mxu0 %v425
    %660 = vmatprep.subr.mxu0 %v423
    %661 = vmatpush1.msra.mxu0 %v422
    %662 = vmatprep.subr.mxu0 %v420
    %663 = vmatpush1.msra.mxu0 %v419
    %664 = vmatprep.subr.mxu0 %v417
    %665 = vmatpush1.msra.mxu0 %v416
    %666 = vmatprep.subr.mxu0 %v414
    %667 = vmatpush1.msra.mxu0 %v413
    %668 = vmatprep.subr.mxu0 0.0
    %669 = vmatpush2.msra.mxu0 0.0
    %670 = vmatprep.subr.mxu0 0.0
    %671 = vmatpush2.msra.mxu0 0.0
    %672 = vmatprep.subr.mxu0 0.0
    %673 = vmatpush2.msra.mxu0 0.0
    %674 = vmatprep.subr.mxu0 0.0
    %675 = vmatpush2.msra.mxu0 0.0
    %676 = vmatprep.subr.mxu0 0.0
    %677 = vmatpush2.msra.mxu0 0.0
    %678 = vmatprep.subr.mxu0 0.0
    %679 = vmatpush2.msra.mxu0 0.0
    %680 = vmatprep.subr.mxu0 0.0
    %681 = vmatpush2.msra.mxu0 0.0
    %682 = vmatprep.subr.mxu0 0.0
    %683 = vmatpush2.msra.mxu0 0.0
    %684 = vmatprep.subr.mxu0 0.0
    %685 = vmatpush2.msra.mxu0 0.0
    %686 = vmatprep.subr.mxu0 0.0
    %687 = vmatpush2.msra.mxu0 0.0
    %688 = vmatprep.subr.mxu0 0.0
    %689 = vmatpush2.msra.mxu0 0.0
    %690 = vmatprep.subr.mxu0 0.0
    %691 = vmatpush2.msra.mxu0 0.0
    %692 = vmatprep.subr.mxu0 0.0
    %693 = vmatpush2.msra.mxu0 0.0
    %694 = vmatprep.subr.mxu0 0.0
    %695 = vmatpush2.msra.mxu0 0.0
    %696 = vmatprep.subr.mxu0 0.0
    %697 = vmatpush2.msra.mxu0 0.0
    %698 = vmatprep.subr.mxu0 0.0
    %699 = vmatpush2.msra.mxu0 0.0
    %700 = vmatprep.mubr.f32.mxu0 0.0
    %701 = vmatmul.mubr.f32.gmra.mxu0 %v635
    %v702 = vpop.f32.mrf.mxu0
    %v703 = vadd.f32 0.0, %v702
    %v704 = vpop.f32.mrf.mxu0
    %v705 = vadd.f32 0.0, %v704
    %706 = vdwg.mxu0
    %707 = vmatprep.subr.mxu0 0.0
    %708 = vmatpush1.msra.mxu0 %v460
    %709 = vmatprep.subr.mxu0 0.0
    %710 = vmatpush1.msra.mxu0 %v457
    %711 = vmatprep.subr.mxu0 0.0
    %712 = vmatpush1.msra.mxu0 %v454
    %713 = vmatprep.subr.mxu0 0.0
    %714 = vmatpush1.msra.mxu0 %v451
    %715 = vmatprep.subr.mxu0 0.0
    %716 = vmatpush1.msra.mxu0 %v448
    %717 = vmatprep.subr.mxu0 0.0
    %718 = vmatpush1.msra.mxu0 %v445
    %719 = vmatprep.subr.mxu0 0.0
    %720 = vmatpush1.msra.mxu0 %v442
    %721 = vmatprep.subr.mxu0 0.0
    %722 = vmatpush1.msra.mxu0 %v439
    %723 = vmatprep.subr.mxu0 0.0
    %724 = vmatpush1.msra.mxu0 %v436
    %725 = vmatprep.subr.mxu0 0.0
    %726 = vmatpush1.msra.mxu0 %v433
    %727 = vmatprep.subr.mxu0 0.0
    %728 = vmatpush1.msra.mxu0 %v430
    %729 = vmatprep.subr.mxu0 0.0
    %730 = vmatpush1.msra.mxu0 %v427
    %731 = vmatprep.subr.mxu0 0.0
    %732 = vmatpush1.msra.mxu0 %v424
    %733 = vmatprep.subr.mxu0 0.0
    %734 = vmatpush1.msra.mxu0 %v421
    %735 = vmatprep.subr.mxu0 0.0
    %736 = vmatpush1.msra.mxu0 %v418
    %737 = vmatprep.subr.mxu0 0.0
    %738 = vmatpush1.msra.mxu0 %v415
    %739 = vmatprep.subr.mxu0 0.0
    %740 = vmatpush2.msra.mxu0 0.0
    %741 = vmatprep.subr.mxu0 0.0
    %742 = vmatpush2.msra.mxu0 0.0
    %743 = vmatprep.subr.mxu0 0.0
    %744 = vmatpush2.msra.mxu0 0.0
    %745 = vmatprep.subr.mxu0 0.0
    %746 = vmatpush2.msra.mxu0 0.0
    %747 = vmatprep.subr.mxu0 0.0
    %748 = vmatpush2.msra.mxu0 0.0
    %749 = vmatprep.subr.mxu0 0.0
    %750 = vmatpush2.msra.mxu0 0.0
    %751 = vmatprep.subr.mxu0 0.0
    %752 = vmatpush2.msra.mxu0 0.0
    %753 = vmatprep.subr.mxu0 0.0
    %754 = vmatpush2.msra.mxu0 0.0
    %755 = vmatprep.subr.mxu0 0.0
    %756 = vmatpush2.msra.mxu0 0.0
    %757 = vmatprep.subr.mxu0 0.0
    %758 = vmatpush2.msra.mxu0 0.0
    %759 = vmatprep.subr.mxu0 0.0
    %760 = vmatpush2.msra.mxu0 0.0
    %761 = vmatprep.subr.mxu0 0.0
    %762 = vmatpush2.msra.mxu0 0.0
    %763 = vmatprep.subr.mxu0 0.0
    %764 = vmatpush2.msra.mxu0 0.0
    %765 = vmatprep.subr.mxu0 0.0
    %766 = vmatpush2.msra.mxu0 0.0
    %767 = vmatprep.subr.mxu0 0.0
    %768 = vmatpush2.msra.mxu0 0.0
    %769 = vmatprep.subr.mxu0 0.0
    %770 = vmatpush2.msra.mxu0 0.0
    %771 = vmatprep.mubr.f32.mxu0 0.0
    %772 = vmatmul.mubr.f32.gmra.mxu0 %v635
    %v773 = vpop.f32.mrf.mxu0
    %v774 = vadd.f32 0.0, %v773
    %v775 = vpop.f32.mrf.mxu0
    %776 = vdwg.mxu0
    %v777 = vlaneseq
    %v778 = vshrl.u32 %v777, 7
    %v779 = vsub.s32 1, %v778
    %v780 = vrot.slane %v337, %v779
    %v781 = vadd.f32 %v780, %v703
    %v782 = vxor.u32 %v781, 2147483648
    %v783 = vmul.f32 %v782, 1.442695
    %v784 = vpow.pop %v783
    %v785 = vadd.f32 %v784, 1.0
    %v786 = vrcp.pop %v785
    %v787 = vmul.f32 1.0, %v786
    %v788 = vlaneseq
    %v789 = vshrl.u32 %v788, 7
    %v790 = vsub.s32 1, %v789
    %v791 = vrot.slane %v339, %v790
    %v792 = vadd.f32 %v791, %v705
    %v793 = vxor.u32 %v792, 2147483648
    %v794 = vmul.f32 %v793, 1.442695
    %v795 = vpow.pop %v794
    %v796 = vadd.f32 %v795, 1.0
    %v797 = vrcp.pop %v796
    %v798 = vmul.f32 1.0, %v797
    %v799 = vadd.f32 %v774, %v411
    %v800 = vmul.f32 %v787, %v799
    %v801 = vlaneseq
    %v802 = vshrl.u32 %v801, 7
    %v803 = vsub.s32 1, %v802
    %v804 = vrot.slane %v408, %v803
    %v805 = vadd.f32 %v804, %v800
    %v806 = vtanh.pop %v805
    %v807 = vsub.f32 1.0, %v798
    %v808 = vmul.f32 %v807, %v806
    %v809 = vmul.f32 %v798, %v635
    %v810 = vadd.f32 %v808, %v809
    %811 = vmatprep.subr.mxu0 %v459
    %812 = vmatpush1.msra.mxu0 %v458
    %813 = vmatprep.subr.mxu0 %v456
    %814 = vmatpush1.msra.mxu0 %v455
    %815 = vmatprep.subr.mxu0 %v453
    %816 = vmatpush1.msra.mxu0 %v452
    %817 = vmatprep.subr.mxu0 %v450
    %818 = vmatpush1.msra.mxu0 %v449
    %819 = vmatprep.subr.mxu0 %v447
    %820 = vmatpush1.msra.mxu0 %v446
    %821 = vmatprep.subr.mxu0 %v444
    %822 = vmatpush1.msra.mxu0 %v443
    %823 = vmatprep.subr.mxu0 %v441
    %824 = vmatpush1.msra.mxu0 %v440
    %825 = vmatprep.subr.mxu0 %v438
    %826 = vmatpush1.msra.mxu0 %v437
    %827 = vmatprep.subr.mxu0 %v435
    %828 = vmatpush1.msra.mxu0 %v434
    %829 = vmatprep.subr.mxu0 %v432
    %830 = vmatpush1.msra.mxu0 %v431
    %831 = vmatprep.subr.mxu0 %v429
    %832 = vmatpush1.msra.mxu0 %v428
    %833 = vmatprep.subr.mxu0 %v426
    %834 = vmatpush1.msra.mxu0 %v425
    %835 = vmatprep.subr.mxu0 %v423
    %836 = vmatpush1.msra.mxu0 %v422
    %837 = vmatprep.subr.mxu0 %v420
    %838 = vmatpush1.msra.mxu0 %v419
    %839 = vmatprep.subr.mxu0 %v417
    %840 = vmatpush1.msra.mxu0 %v416
    %841 = vmatprep.subr.mxu0 %v414
    %842 = vmatpush1.msra.mxu0 %v413
    %843 = vmatprep.subr.mxu0 0.0
    %844 = vmatpush2.msra.mxu0 0.0
    %845 = vmatprep.subr.mxu0 0.0
    %846 = vmatpush2.msra.mxu0 0.0
    %847 = vmatprep.subr.mxu0 0.0
    %848 = vmatpush2.msra.mxu0 0.0
    %849 = vmatprep.subr.mxu0 0.0
    %850 = vmatpush2.msra.mxu0 0.0
    %851 = vmatprep.subr.mxu0 0.0
    %852 = vmatpush2.msra.mxu0 0.0
    %853 = vmatprep.subr.mxu0 0.0
    %854 = vmatpush2.msra.mxu0 0.0
    %855 = vmatprep.subr.mxu0 0.0
    %856 = vmatpush2.msra.mxu0 0.0
    %857 = vmatprep.subr.mxu0 0.0
    %858 = vmatpush2.msra.mxu0 0.0
    %859 = vmatprep.subr.mxu0 0.0
    %860 = vmatpush2.msra.mxu0 0.0
    %861 = vmatprep.subr.mxu0 0.0
    %862 = vmatpush2.msra.mxu0 0.0
    %863 = vmatprep.subr.mxu0 0.0
    %864 = vmatpush2.msra.mxu0 0.0
    %865 = vmatprep.subr.mxu0 0.0
    %866 = vmatpush2.msra.mxu0 0.0
    %867 = vmatprep.subr.mxu0 0.0
    %868 = vmatpush2.msra.mxu0 0.0
    %869 = vmatprep.subr.mxu0 0.0
    %870 = vmatpush2.msra.mxu0 0.0
    %871 = vmatprep.subr.mxu0 0.0
    %872 = vmatpush2.msra.mxu0 0.0
    %873 = vmatprep.subr.mxu0 0.0
    %874 = vmatpush2.msra.mxu0 0.0
    %875 = vmatprep.mubr.f32.mxu0 0.0
    %876 = vmatmul.mubr.f32.gmra.mxu0 %v810
    %v877 = vpop.f32.mrf.mxu0
    %v878 = vadd.f32 0.0, %v877
    %v879 = vpop.f32.mrf.mxu0
    %v880 = vadd.f32 0.0, %v879
    %881 = vdwg.mxu0
    %882 = vmatprep.subr.mxu0 0.0
    %883 = vmatpush1.msra.mxu0 %v460
    %884 = vmatprep.subr.mxu0 0.0
    %885 = vmatpush1.msra.mxu0 %v457
    %886 = vmatprep.subr.mxu0 0.0
    %887 = vmatpush1.msra.mxu0 %v454
    %888 = vmatprep.subr.mxu0 0.0
    %889 = vmatpush1.msra.mxu0 %v451
    %890 = vmatprep.subr.mxu0 0.0
    %891 = vmatpush1.msra.mxu0 %v448
    %892 = vmatprep.subr.mxu0 0.0
    %893 = vmatpush1.msra.mxu0 %v445
    %894 = vmatprep.subr.mxu0 0.0
    %895 = vmatpush1.msra.mxu0 %v442
    %896 = vmatprep.subr.mxu0 0.0
    %897 = vmatpush1.msra.mxu0 %v439
    %898 = vmatprep.subr.mxu0 0.0
    %899 = vmatpush1.msra.mxu0 %v436
    %900 = vmatprep.subr.mxu0 0.0
    %901 = vmatpush1.msra.mxu0 %v433
    %902 = vmatprep.subr.mxu0 0.0
    %903 = vmatpush1.msra.mxu0 %v430
    %904 = vmatprep.subr.mxu0 0.0
    %905 = vmatpush1.msra.mxu0 %v427
    %906 = vmatprep.subr.mxu0 0.0
    %907 = vmatpush1.msra.mxu0 %v424
    %908 = vmatprep.subr.mxu0 0.0
    %909 = vmatpush1.msra.mxu0 %v421
    %910 = vmatprep.subr.mxu0 0.0
    %911 = vmatpush1.msra.mxu0 %v418
    %912 = vmatprep.subr.mxu0 0.0
    %913 = vmatpush1.msra.mxu0 %v415
    %914 = vmatprep.subr.mxu0 0.0
    %915 = vmatpush2.msra.mxu0 0.0
    %916 = vmatprep.subr.mxu0 0.0
    %917 = vmatpush2.msra.mxu0 0.0
    %918 = vmatprep.subr.mxu0 0.0
    %919 = vmatpush2.msra.mxu0 0.0
    %920 = vmatprep.subr.mxu0 0.0
    %921 = vmatpush2.msra.mxu0 0.0
    %922 = vmatprep.subr.mxu0 0.0
    %923 = vmatpush2.msra.mxu0 0.0
    %924 = vmatprep.subr.mxu0 0.0
    %925 = vmatpush2.msra.mxu0 0.0
    %926 = vmatprep.subr.mxu0 0.0
    %927 = vmatpush2.msra.mxu0 0.0
    %928 = vmatprep.subr.mxu0 0.0
    %929 = vmatpush2.msra.mxu0 0.0
    %930 = vmatprep.subr.mxu0 0.0
    %931 = vmatpush2.msra.mxu0 0.0
    %932 = vmatprep.subr.mxu0 0.0
    %933 = vmatpush2.msra.mxu0 0.0
    %934 = vmatprep.subr.mxu0 0.0
    %935 = vmatpush2.msra.mxu0 0.0
    %936 = vmatprep.subr.mxu0 0.0
    %937 = vmatpush2.msra.mxu0 0.0
    %938 = vmatprep.subr.mxu0 0.0
    %939 = vmatpush2.msra.mxu0 0.0
    %940 = vmatprep.subr.mxu0 0.0
    %941 = vmatpush2.msra.mxu0 0.0
    %942 = vmatprep.subr.mxu0 0.0
    %943 = vmatpush2.msra.mxu0 0.0
    %944 = vmatprep.subr.mxu0 0.0
    %945 = vmatpush2.msra.mxu0 0.0
    %946 = vmatprep.mubr.f32.mxu0 0.0
    %947 = vmatmul.mubr.f32.gmra.mxu0 %v810
    %v948 = vpop.f32.mrf.mxu0
    %v949 = vadd.f32 0.0, %v948
    %v950 = vpop.f32.mrf.mxu0
    %951 = vdwg.mxu0
    %v952 = vlaneseq
    %v953 = vshrl.u32 %v952, 7
    %v954 = vsub.s32 2, %v953
    %v955 = vrot.slane %v337, %v954
    %v956 = vadd.f32 %v955, %v878
    %v957 = vxor.u32 %v956, 2147483648
    %v958 = vmul.f32 %v957, 1.442695
    %v959 = vpow.pop %v958
    %v960 = vadd.f32 %v959, 1.0
    %v961 = vrcp.pop %v960
    %v962 = vmul.f32 1.0, %v961
    %v963 = vlaneseq
    %v964 = vshrl.u32 %v963, 7
    %v965 = vsub.s32 2, %v964
    %v966 = vrot.slane %v339, %v965
    %v967 = vadd.f32 %v966, %v880
    %v968 = vxor.u32 %v967, 2147483648
    %v969 = vmul.f32 %v968, 1.442695
    %v970 = vpow.pop %v969
    %v971 = vadd.f32 %v970, 1.0
    %v972 = vrcp.pop %v971
    %v973 = vmul.f32 1.0, %v972
    %v974 = vadd.f32 %v949, %v411
    %v975 = vmul.f32 %v962, %v974
    %v976 = vlaneseq
    %v977 = vshrl.u32 %v976, 7
    %v978 = vsub.s32 2, %v977
    %v979 = vrot.slane %v408, %v978
    %v980 = vadd.f32 %v979, %v975
    %v981 = vtanh.pop %v980
    %v982 = vsub.f32 1.0, %v973
    %v983 = vmul.f32 %v982, %v981
    %v984 = vmul.f32 %v973, %v810
    %v985 = vadd.f32 %v983, %v984
    %986 = vmatprep.subr.mxu0 %v459
    %987 = vmatpush1.msra.mxu0 %v458
    %988 = vmatprep.subr.mxu0 %v456
    %989 = vmatpush1.msra.mxu0 %v455
    %990 = vmatprep.subr.mxu0 %v453
    %991 = vmatpush1.msra.mxu0 %v452
    %992 = vmatprep.subr.mxu0 %v450
    %993 = vmatpush1.msra.mxu0 %v449
    %994 = vmatprep.subr.mxu0 %v447
    %995 = vmatpush1.msra.mxu0 %v446
    %996 = vmatprep.subr.mxu0 %v444
    %997 = vmatpush1.msra.mxu0 %v443
    %998 = vmatprep.subr.mxu0 %v441
    %999 = vmatpush1.msra.mxu0 %v440
    %1000 = vmatprep.subr.mxu0 %v438
    %1001 = vmatpush1.msra.mxu0 %v437
    %1002 = vmatprep.subr.mxu0 %v435
    %1003 = vmatpush1.msra.mxu0 %v434
    %1004 = vmatprep.subr.mxu0 %v432
    %1005 = vmatpush1.msra.mxu0 %v431
    %1006 = vmatprep.subr.mxu0 %v429
    %1007 = vmatpush1.msra.mxu0 %v428
    %1008 = vmatprep.subr.mxu0 %v426
    %1009 = vmatpush1.msra.mxu0 %v425
    %1010 = vmatprep.subr.mxu0 %v423
    %1011 = vmatpush1.msra.mxu0 %v422
    %1012 = vmatprep.subr.mxu0 %v420
    %1013 = vmatpush1.msra.mxu0 %v419
    %1014 = vmatprep.subr.mxu0 %v417
    %1015 = vmatpush1.msra.mxu0 %v416
    %1016 = vmatprep.subr.mxu0 %v414
    %1017 = vmatpush1.msra.mxu0 %v413
    %1018 = vmatprep.subr.mxu0 0.0
    %1019 = vmatpush2.msra.mxu0 0.0
    %1020 = vmatprep.subr.mxu0 0.0
    %1021 = vmatpush2.msra.mxu0 0.0
    %1022 = vmatprep.subr.mxu0 0.0
    %1023 = vmatpush2.msra.mxu0 0.0
    %1024 = vmatprep.subr.mxu0 0.0
    %1025 = vmatpush2.msra.mxu0 0.0
    %1026 = vmatprep.subr.mxu0 0.0
    %1027 = vmatpush2.msra.mxu0 0.0
    %1028 = vmatprep.subr.mxu0 0.0
    %1029 = vmatpush2.msra.mxu0 0.0
    %1030 = vmatprep.subr.mxu0 0.0
    %1031 = vmatpush2.msra.mxu0 0.0
    %1032 = vmatprep.subr.mxu0 0.0
    %1033 = vmatpush2.msra.mxu0 0.0
    %1034 = vmatprep.subr.mxu0 0.0
    %1035 = vmatpush2.msra.mxu0 0.0
    %1036 = vmatprep.subr.mxu0 0.0
    %1037 = vmatpush2.msra.mxu0 0.0
    %1038 = vmatprep.subr.mxu0 0.0
    %1039 = vmatpush2.msra.mxu0 0.0
    %1040 = vmatprep.subr.mxu0 0.0
    %1041 = vmatpush2.msra.mxu0 0.0
    %1042 = vmatprep.subr.mxu0 0.0
    %1043 = vmatpush2.msra.mxu0 0.0
    %1044 = vmatprep.subr.mxu0 0.0
    %1045 = vmatpush2.msra.mxu0 0.0
    %1046 = vmatprep.subr.mxu0 0.0
    %1047 = vmatpush2.msra.mxu0 0.0
    %1048 = vmatprep.subr.mxu0 0.0
    %1049 = vmatpush2.msra.mxu0 0.0
    %1050 = vmatprep.mubr.f32.mxu0 0.0
    %1051 = vmatmul.mubr.f32.gmra.mxu0 %v985
    %v1052 = vpop.f32.mrf.mxu0
    %v1053 = vadd.f32 0.0, %v1052
    %v1054 = vpop.f32.mrf.mxu0
    %v1055 = vadd.f32 0.0, %v1054
    %1056 = vdwg.mxu0
    %1057 = vmatprep.subr.mxu0 0.0
    %1058 = vmatpush1.msra.mxu0 %v460
    %1059 = vmatprep.subr.mxu0 0.0
    %1060 = vmatpush1.msra.mxu0 %v457
    %1061 = vmatprep.subr.mxu0 0.0
    %1062 = vmatpush1.msra.mxu0 %v454
    %1063 = vmatprep.subr.mxu0 0.0
    %1064 = vmatpush1.msra.mxu0 %v451
    %1065 = vmatprep.subr.mxu0 0.0
    %1066 = vmatpush1.msra.mxu0 %v448
    %1067 = vmatprep.subr.mxu0 0.0
    %1068 = vmatpush1.msra.mxu0 %v445
    %1069 = vmatprep.subr.mxu0 0.0
    %1070 = vmatpush1.msra.mxu0 %v442
    %1071 = vmatprep.subr.mxu0 0.0
    %1072 = vmatpush1.msra.mxu0 %v439
    %1073 = vmatprep.subr.mxu0 0.0
    %1074 = vmatpush1.msra.mxu0 %v436
    %1075 = vmatprep.subr.mxu0 0.0
    %1076 = vmatpush1.msra.mxu0 %v433
    %1077 = vmatprep.subr.mxu0 0.0
    %1078 = vmatpush1.msra.mxu0 %v430
    %1079 = vmatprep.subr.mxu0 0.0
    %1080 = vmatpush1.msra.mxu0 %v427
    %1081 = vmatprep.subr.mxu0 0.0
    %1082 = vmatpush1.msra.mxu0 %v424
    %1083 = vmatprep.subr.mxu0 0.0
    %1084 = vmatpush1.msra.mxu0 %v421
    %1085 = vmatprep.subr.mxu0 0.0
    %1086 = vmatpush1.msra.mxu0 %v418
    %1087 = vmatprep.subr.mxu0 0.0
    %1088 = vmatpush1.msra.mxu0 %v415
    %1089 = vmatprep.subr.mxu0 0.0
    %1090 = vmatpush2.msra.mxu0 0.0
    %1091 = vmatprep.subr.mxu0 0.0
    %1092 = vmatpush2.msra.mxu0 0.0
    %1093 = vmatprep.subr.mxu0 0.0
    %1094 = vmatpush2.msra.mxu0 0.0
    %1095 = vmatprep.subr.mxu0 0.0
    %1096 = vmatpush2.msra.mxu0 0.0
    %1097 = vmatprep.subr.mxu0 0.0
    %1098 = vmatpush2.msra.mxu0 0.0
    %1099 = vmatprep.subr.mxu0 0.0
    %1100 = vmatpush2.msra.mxu0 0.0
    %1101 = vmatprep.subr.mxu0 0.0
    %1102 = vmatpush2.msra.mxu0 0.0
    %1103 = vmatprep.subr.mxu0 0.0
    %1104 = vmatpush2.msra.mxu0 0.0
    %1105 = vmatprep.subr.mxu0 0.0
    %1106 = vmatpush2.msra.mxu0 0.0
    %1107 = vmatprep.subr.mxu0 0.0
    %1108 = vmatpush2.msra.mxu0 0.0
    %1109 = vmatprep.subr.mxu0 0.0
    %1110 = vmatpush2.msra.mxu0 0.0
    %1111 = vmatprep.subr.mxu0 0.0
    %1112 = vmatpush2.msra.mxu0 0.0
    %1113 = vmatprep.subr.mxu0 0.0
    %1114 = vmatpush2.msra.mxu0 0.0
    %1115 = vmatprep.subr.mxu0 0.0
    %1116 = vmatpush2.msra.mxu0 0.0
    %1117 = vmatprep.subr.mxu0 0.0
    %1118 = vmatpush2.msra.mxu0 0.0
    %1119 = vmatprep.subr.mxu0 0.0
    %1120 = vmatpush2.msra.mxu0 0.0
    %1121 = vmatprep.mubr.f32.mxu0 0.0
    %1122 = vmatmul.mubr.f32.gmra.mxu0 %v985
    %v1123 = vpop.f32.mrf.mxu0
    %v1124 = vadd.f32 0.0, %v1123
    %v1125 = vpop.f32.mrf.mxu0
    %1126 = vdwg.mxu0
    %v1127 = vlaneseq
    %v1128 = vshrl.u32 %v1127, 7
    %v1129 = vsub.s32 3, %v1128
    %v1130 = vrot.slane %v337, %v1129
    %v1131 = vadd.f32 %v1130, %v1053
    %v1132 = vxor.u32 %v1131, 2147483648
    %v1133 = vmul.f32 %v1132, 1.442695
    %v1134 = vpow.pop %v1133
    %v1135 = vadd.f32 %v1134, 1.0
    %v1136 = vrcp.pop %v1135
    %v1137 = vmul.f32 1.0, %v1136
    %v1138 = vlaneseq
    %v1139 = vshrl.u32 %v1138, 7
    %v1140 = vsub.s32 3, %v1139
    %v1141 = vrot.slane %v339, %v1140
    %v1142 = vadd.f32 %v1141, %v1055
    %v1143 = vxor.u32 %v1142, 2147483648
    %v1144 = vmul.f32 %v1143, 1.442695
    %v1145 = vpow.pop %v1144
    %v1146 = vadd.f32 %v1145, 1.0
    %v1147 = vrcp.pop %v1146
    %v1148 = vmul.f32 1.0, %v1147
    %v1149 = vadd.f32 %v1124, %v411
    %v1150 = vmul.f32 %v1137, %v1149
    %v1151 = vlaneseq
    %v1152 = vshrl.u32 %v1151, 7
    %v1153 = vsub.s32 3, %v1152
    %v1154 = vrot.slane %v408, %v1153
    %v1155 = vadd.f32 %v1154, %v1150
    %v1156 = vtanh.pop %v1155
    %v1157 = vsub.f32 1.0, %v1148
    %v1158 = vmul.f32 %v1157, %v1156
    %v1159 = vmul.f32 %v1148, %v985
    %v1160 = vadd.f32 %v1158, %v1159
    %1161 = vmatprep.subr.mxu0 %v459
    %1162 = vmatpush1.msra.mxu0 %v458
    %1163 = vmatprep.subr.mxu0 %v456
    %1164 = vmatpush1.msra.mxu0 %v455
    %1165 = vmatprep.subr.mxu0 %v453
    %1166 = vmatpush1.msra.mxu0 %v452
    %1167 = vmatprep.subr.mxu0 %v450
    %1168 = vmatpush1.msra.mxu0 %v449
    %1169 = vmatprep.subr.mxu0 %v447
    %1170 = vmatpush1.msra.mxu0 %v446
    %1171 = vmatprep.subr.mxu0 %v444
    %1172 = vmatpush1.msra.mxu0 %v443
    %1173 = vmatprep.subr.mxu0 %v441
    %1174 = vmatpush1.msra.mxu0 %v440
    %1175 = vmatprep.subr.mxu0 %v438
    %1176 = vmatpush1.msra.mxu0 %v437
    %1177 = vmatprep.subr.mxu0 %v435
    %1178 = vmatpush1.msra.mxu0 %v434
    %1179 = vmatprep.subr.mxu0 %v432
    %1180 = vmatpush1.msra.mxu0 %v431
    %1181 = vmatprep.subr.mxu0 %v429
    %1182 = vmatpush1.msra.mxu0 %v428
    %1183 = vmatprep.subr.mxu0 %v426
    %1184 = vmatpush1.msra.mxu0 %v425
    %1185 = vmatprep.subr.mxu0 %v423
    %1186 = vmatpush1.msra.mxu0 %v422
    %1187 = vmatprep.subr.mxu0 %v420
    %1188 = vmatpush1.msra.mxu0 %v419
    %1189 = vmatprep.subr.mxu0 %v417
    %1190 = vmatpush1.msra.mxu0 %v416
    %1191 = vmatprep.subr.mxu0 %v414
    %1192 = vmatpush1.msra.mxu0 %v413
    %1193 = vmatprep.subr.mxu0 0.0
    %1194 = vmatpush2.msra.mxu0 0.0
    %1195 = vmatprep.subr.mxu0 0.0
    %1196 = vmatpush2.msra.mxu0 0.0
    %1197 = vmatprep.subr.mxu0 0.0
    %1198 = vmatpush2.msra.mxu0 0.0
    %1199 = vmatprep.subr.mxu0 0.0
    %1200 = vmatpush2.msra.mxu0 0.0
    %1201 = vmatprep.subr.mxu0 0.0
    %1202 = vmatpush2.msra.mxu0 0.0
    %1203 = vmatprep.subr.mxu0 0.0
    %1204 = vmatpush2.msra.mxu0 0.0
    %1205 = vmatprep.subr.mxu0 0.0
    %1206 = vmatpush2.msra.mxu0 0.0
    %1207 = vmatprep.subr.mxu0 0.0
    %1208 = vmatpush2.msra.mxu0 0.0
    %1209 = vmatprep.subr.mxu0 0.0
    %1210 = vmatpush2.msra.mxu0 0.0
    %1211 = vmatprep.subr.mxu0 0.0
    %1212 = vmatpush2.msra.mxu0 0.0
    %1213 = vmatprep.subr.mxu0 0.0
    %1214 = vmatpush2.msra.mxu0 0.0
    %1215 = vmatprep.subr.mxu0 0.0
    %1216 = vmatpush2.msra.mxu0 0.0
    %1217 = vmatprep.subr.mxu0 0.0
    %1218 = vmatpush2.msra.mxu0 0.0
    %1219 = vmatprep.subr.mxu0 0.0
    %1220 = vmatpush2.msra.mxu0 0.0
    %1221 = vmatprep.subr.mxu0 0.0
    %1222 = vmatpush2.msra.mxu0 0.0
    %1223 = vmatprep.subr.mxu0 0.0
    %1224 = vmatpush2.msra.mxu0 0.0
    %1225 = vmatprep.mubr.f32.mxu0 0.0
    %1226 = vmatmul.mubr.f32.gmra.mxu0 %v1160
    %v1227 = vpop.f32.mrf.mxu0
    %v1228 = vadd.f32 0.0, %v1227
    %v1229 = vpop.f32.mrf.mxu0
    %v1230 = vadd.f32 0.0, %v1229
    %1231 = vdwg.mxu0
    %1232 = vmatprep.subr.mxu0 0.0
    %1233 = vmatpush1.msra.mxu0 %v460
    %1234 = vmatprep.subr.mxu0 0.0
    %1235 = vmatpush1.msra.mxu0 %v457
    %1236 = vmatprep.subr.mxu0 0.0
    %1237 = vmatpush1.msra.mxu0 %v454
    %1238 = vmatprep.subr.mxu0 0.0
    %1239 = vmatpush1.msra.mxu0 %v451
    %1240 = vmatprep.subr.mxu0 0.0
    %1241 = vmatpush1.msra.mxu0 %v448
    %1242 = vmatprep.subr.mxu0 0.0
    %1243 = vmatpush1.msra.mxu0 %v445
    %1244 = vmatprep.subr.mxu0 0.0
    %1245 = vmatpush1.msra.mxu0 %v442
    %1246 = vmatprep.subr.mxu0 0.0
    %1247 = vmatpush1.msra.mxu0 %v439
    %1248 = vmatprep.subr.mxu0 0.0
    %1249 = vmatpush1.msra.mxu0 %v436
    %1250 = vmatprep.subr.mxu0 0.0
    %1251 = vmatpush1.msra.mxu0 %v433
    %1252 = vmatprep.subr.mxu0 0.0
    %1253 = vmatpush1.msra.mxu0 %v430
    %1254 = vmatprep.subr.mxu0 0.0
    %1255 = vmatpush1.msra.mxu0 %v427
    %1256 = vmatprep.subr.mxu0 0.0
    %1257 = vmatpush1.msra.mxu0 %v424
    %1258 = vmatprep.subr.mxu0 0.0
    %1259 = vmatpush1.msra.mxu0 %v421
    %1260 = vmatprep.subr.mxu0 0.0
    %1261 = vmatpush1.msra.mxu0 %v418
    %1262 = vmatprep.subr.mxu0 0.0
    %1263 = vmatpush1.msra.mxu0 %v415
    %1264 = vmatprep.subr.mxu0 0.0
    %1265 = vmatpush2.msra.mxu0 0.0
    %1266 = vmatprep.subr.mxu0 0.0
    %1267 = vmatpush2.msra.mxu0 0.0
    %1268 = vmatprep.subr.mxu0 0.0
    %1269 = vmatpush2.msra.mxu0 0.0
    %1270 = vmatprep.subr.mxu0 0.0
    %1271 = vmatpush2.msra.mxu0 0.0
    %1272 = vmatprep.subr.mxu0 0.0
    %1273 = vmatpush2.msra.mxu0 0.0
    %1274 = vmatprep.subr.mxu0 0.0
    %1275 = vmatpush2.msra.mxu0 0.0
    %1276 = vmatprep.subr.mxu0 0.0
    %1277 = vmatpush2.msra.mxu0 0.0
    %1278 = vmatprep.subr.mxu0 0.0
    %1279 = vmatpush2.msra.mxu0 0.0
    %1280 = vmatprep.subr.mxu0 0.0
    %1281 = vmatpush2.msra.mxu0 0.0
    %1282 = vmatprep.subr.mxu0 0.0
    %1283 = vmatpush2.msra.mxu0 0.0
    %1284 = vmatprep.subr.mxu0 0.0
    %1285 = vmatpush2.msra.mxu0 0.0
    %1286 = vmatprep.subr.mxu0 0.0
    %1287 = vmatpush2.msra.mxu0 0.0
    %1288 = vmatprep.subr.mxu0 0.0
    %1289 = vmatpush2.msra.mxu0 0.0
    %1290 = vmatprep.subr.mxu0 0.0
    %1291 = vmatpush2.msra.mxu0 0.0
    %1292 = vmatprep.subr.mxu0 0.0
    %1293 = vmatpush2.msra.mxu0 0.0
    %1294 = vmatprep.subr.mxu0 0.0
    %1295 = vmatpush2.msra.mxu0 0.0
    %1296 = vmatprep.mubr.f32.mxu0 0.0
    %1297 = vmatmul.mubr.f32.gmra.mxu0 %v1160
    %v1298 = vpop.f32.mrf.mxu0
    %v1299 = vadd.f32 0.0, %v1298
    %v1300 = vpop.f32.mrf.mxu0
    %1301 = vdwg.mxu0
    %v1302 = vlaneseq
    %v1303 = vshrl.u32 %v1302, 7
    %v1304 = vsub.s32 4, %v1303
    %v1305 = vrot.slane %v337, %v1304
    %v1306 = vadd.f32 %v1305, %v1228
    %v1307 = vxor.u32 %v1306, 2147483648
    %v1308 = vmul.f32 %v1307, 1.442695
    %v1309 = vpow.pop %v1308
    %v1310 = vadd.f32 %v1309, 1.0
    %v1311 = vrcp.pop %v1310
    %v1312 = vmul.f32 1.0, %v1311
    %v1313 = vlaneseq
    %v1314 = vshrl.u32 %v1313, 7
    %v1315 = vsub.s32 4, %v1314
    %v1316 = vrot.slane %v339, %v1315
    %v1317 = vadd.f32 %v1316, %v1230
    %v1318 = vxor.u32 %v1317, 2147483648
    %v1319 = vmul.f32 %v1318, 1.442695
    %v1320 = vpow.pop %v1319
    %v1321 = vadd.f32 %v1320, 1.0
    %v1322 = vrcp.pop %v1321
    %v1323 = vmul.f32 1.0, %v1322
    %v1324 = vadd.f32 %v1299, %v411
    %v1325 = vmul.f32 %v1312, %v1324
    %v1326 = vlaneseq
    %v1327 = vshrl.u32 %v1326, 7
    %v1328 = vsub.s32 4, %v1327
    %v1329 = vrot.slane %v408, %v1328
    %v1330 = vadd.f32 %v1329, %v1325
    %v1331 = vtanh.pop %v1330
    %v1332 = vsub.f32 1.0, %v1323
    %v1333 = vmul.f32 %v1332, %v1331
    %v1334 = vmul.f32 %v1323, %v1160
    %v1335 = vadd.f32 %v1333, %v1334
    %1336 = vmatprep.subr.mxu0 %v459
    %1337 = vmatpush1.msra.mxu0 %v458
    %1338 = vmatprep.subr.mxu0 %v456
    %1339 = vmatpush1.msra.mxu0 %v455
    %1340 = vmatprep.subr.mxu0 %v453
    %1341 = vmatpush1.msra.mxu0 %v452
    %1342 = vmatprep.subr.mxu0 %v450
    %1343 = vmatpush1.msra.mxu0 %v449
    %1344 = vmatprep.subr.mxu0 %v447
    %1345 = vmatpush1.msra.mxu0 %v446
    %1346 = vmatprep.subr.mxu0 %v444
    %1347 = vmatpush1.msra.mxu0 %v443
    %1348 = vmatprep.subr.mxu0 %v441
    %1349 = vmatpush1.msra.mxu0 %v440
    %1350 = vmatprep.subr.mxu0 %v438
    %1351 = vmatpush1.msra.mxu0 %v437
    %1352 = vmatprep.subr.mxu0 %v435
    %1353 = vmatpush1.msra.mxu0 %v434
    %1354 = vmatprep.subr.mxu0 %v432
    %1355 = vmatpush1.msra.mxu0 %v431
    %1356 = vmatprep.subr.mxu0 %v429
    %1357 = vmatpush1.msra.mxu0 %v428
    %1358 = vmatprep.subr.mxu0 %v426
    %1359 = vmatpush1.msra.mxu0 %v425
    %1360 = vmatprep.subr.mxu0 %v423
    %1361 = vmatpush1.msra.mxu0 %v422
    %1362 = vmatprep.subr.mxu0 %v420
    %1363 = vmatpush1.msra.mxu0 %v419
    %1364 = vmatprep.subr.mxu0 %v417
    %1365 = vmatpush1.msra.mxu0 %v416
    %1366 = vmatprep.subr.mxu0 %v414
    %1367 = vmatpush1.msra.mxu0 %v413
    %1368 = vmatprep.subr.mxu0 0.0
    %1369 = vmatpush2.msra.mxu0 0.0
    %1370 = vmatprep.subr.mxu0 0.0
    %1371 = vmatpush2.msra.mxu0 0.0
    %1372 = vmatprep.subr.mxu0 0.0
    %1373 = vmatpush2.msra.mxu0 0.0
    %1374 = vmatprep.subr.mxu0 0.0
    %1375 = vmatpush2.msra.mxu0 0.0
    %1376 = vmatprep.subr.mxu0 0.0
    %1377 = vmatpush2.msra.mxu0 0.0
    %1378 = vmatprep.subr.mxu0 0.0
    %1379 = vmatpush2.msra.mxu0 0.0
    %1380 = vmatprep.subr.mxu0 0.0
    %1381 = vmatpush2.msra.mxu0 0.0
    %1382 = vmatprep.subr.mxu0 0.0
    %1383 = vmatpush2.msra.mxu0 0.0
    %1384 = vmatprep.subr.mxu0 0.0
    %1385 = vmatpush2.msra.mxu0 0.0
    %1386 = vmatprep.subr.mxu0 0.0
    %1387 = vmatpush2.msra.mxu0 0.0
    %1388 = vmatprep.subr.mxu0 0.0
    %1389 = vmatpush2.msra.mxu0 0.0
    %1390 = vmatprep.subr.mxu0 0.0
    %1391 = vmatpush2.msra.mxu0 0.0
    %1392 = vmatprep.subr.mxu0 0.0
    %1393 = vmatpush2.msra.mxu0 0.0
    %1394 = vmatprep.subr.mxu0 0.0
    %1395 = vmatpush2.msra.mxu0 0.0
    %1396 = vmatprep.subr.mxu0 0.0
    %1397 = vmatpush2.msra.mxu0 0.0
    %1398 = vmatprep.subr.mxu0 0.0
    %1399 = vmatpush2.msra.mxu0 0.0
    %1400 = vmatprep.mubr.f32.mxu0 0.0
    %1401 = vmatmul.mubr.f32.gmra.mxu0 %v1335
    %v1402 = vpop.f32.mrf.mxu0
    %v1403 = vadd.f32 0.0, %v1402
    %v1404 = vpop.f32.mrf.mxu0
    %v1405 = vadd.f32 0.0, %v1404
    %1406 = vdwg.mxu0
    %1407 = vmatprep.subr.mxu0 0.0
    %1408 = vmatpush1.msra.mxu0 %v460
    %1409 = vmatprep.subr.mxu0 0.0
    %1410 = vmatpush1.msra.mxu0 %v457
    %1411 = vmatprep.subr.mxu0 0.0
    %1412 = vmatpush1.msra.mxu0 %v454
    %1413 = vmatprep.subr.mxu0 0.0
    %1414 = vmatpush1.msra.mxu0 %v451
    %1415 = vmatprep.subr.mxu0 0.0
    %1416 = vmatpush1.msra.mxu0 %v448
    %1417 = vmatprep.subr.mxu0 0.0
    %1418 = vmatpush1.msra.mxu0 %v445
    %1419 = vmatprep.subr.mxu0 0.0
    %1420 = vmatpush1.msra.mxu0 %v442
    %1421 = vmatprep.subr.mxu0 0.0
    %1422 = vmatpush1.msra.mxu0 %v439
    %1423 = vmatprep.subr.mxu0 0.0
    %1424 = vmatpush1.msra.mxu0 %v436
    %1425 = vmatprep.subr.mxu0 0.0
    %1426 = vmatpush1.msra.mxu0 %v433
    %1427 = vmatprep.subr.mxu0 0.0
    %1428 = vmatpush1.msra.mxu0 %v430
    %1429 = vmatprep.subr.mxu0 0.0
    %1430 = vmatpush1.msra.mxu0 %v427
    %1431 = vmatprep.subr.mxu0 0.0
    %1432 = vmatpush1.msra.mxu0 %v424
    %1433 = vmatprep.subr.mxu0 0.0
    %1434 = vmatpush1.msra.mxu0 %v421
    %1435 = vmatprep.subr.mxu0 0.0
    %1436 = vmatpush1.msra.mxu0 %v418
    %1437 = vmatprep.subr.mxu0 0.0
    %1438 = vmatpush1.msra.mxu0 %v415
    %1439 = vmatprep.subr.mxu0 0.0
    %1440 = vmatpush2.msra.mxu0 0.0
    %1441 = vmatprep.subr.mxu0 0.0
    %1442 = vmatpush2.msra.mxu0 0.0
    %1443 = vmatprep.subr.mxu0 0.0
    %1444 = vmatpush2.msra.mxu0 0.0
    %1445 = vmatprep.subr.mxu0 0.0
    %1446 = vmatpush2.msra.mxu0 0.0
    %1447 = vmatprep.subr.mxu0 0.0
    %1448 = vmatpush2.msra.mxu0 0.0
    %1449 = vmatprep.subr.mxu0 0.0
    %1450 = vmatpush2.msra.mxu0 0.0
    %1451 = vmatprep.subr.mxu0 0.0
    %1452 = vmatpush2.msra.mxu0 0.0
    %1453 = vmatprep.subr.mxu0 0.0
    %1454 = vmatpush2.msra.mxu0 0.0
    %1455 = vmatprep.subr.mxu0 0.0
    %1456 = vmatpush2.msra.mxu0 0.0
    %1457 = vmatprep.subr.mxu0 0.0
    %1458 = vmatpush2.msra.mxu0 0.0
    %1459 = vmatprep.subr.mxu0 0.0
    %1460 = vmatpush2.msra.mxu0 0.0
    %1461 = vmatprep.subr.mxu0 0.0
    %1462 = vmatpush2.msra.mxu0 0.0
    %1463 = vmatprep.subr.mxu0 0.0
    %1464 = vmatpush2.msra.mxu0 0.0
    %1465 = vmatprep.subr.mxu0 0.0
    %1466 = vmatpush2.msra.mxu0 0.0
    %1467 = vmatprep.subr.mxu0 0.0
    %1468 = vmatpush2.msra.mxu0 0.0
    %1469 = vmatprep.subr.mxu0 0.0
    %1470 = vmatpush2.msra.mxu0 0.0
    %1471 = vmatprep.mubr.f32.mxu0 0.0
    %1472 = vmatmul.mubr.f32.gmra.mxu0 %v1335
    %v1473 = vpop.f32.mrf.mxu0
    %v1474 = vadd.f32 0.0, %v1473
    %v1475 = vpop.f32.mrf.mxu0
    %1476 = vdwg.mxu0
    %v1477 = vlaneseq
    %v1478 = vshrl.u32 %v1477, 7
    %v1479 = vsub.s32 5, %v1478
    %v1480 = vrot.slane %v337, %v1479
    %v1481 = vadd.f32 %v1480, %v1403
    %v1482 = vxor.u32 %v1481, 2147483648
    %v1483 = vmul.f32 %v1482, 1.442695
    %v1484 = vpow.pop %v1483
    %v1485 = vadd.f32 %v1484, 1.0
    %v1486 = vrcp.pop %v1485
    %v1487 = vmul.f32 1.0, %v1486
    %v1488 = vlaneseq
    %v1489 = vshrl.u32 %v1488, 7
    %v1490 = vsub.s32 5, %v1489
    %v1491 = vrot.slane %v339, %v1490
    %v1492 = vadd.f32 %v1491, %v1405
    %v1493 = vxor.u32 %v1492, 2147483648
    %v1494 = vmul.f32 %v1493, 1.442695
    %v1495 = vpow.pop %v1494
    %v1496 = vadd.f32 %v1495, 1.0
    %v1497 = vrcp.pop %v1496
    %v1498 = vmul.f32 1.0, %v1497
    %v1499 = vadd.f32 %v1474, %v411
    %v1500 = vmul.f32 %v1487, %v1499
    %v1501 = vlaneseq
    %v1502 = vshrl.u32 %v1501, 7
    %v1503 = vsub.s32 5, %v1502
    %v1504 = vrot.slane %v408, %v1503
    %v1505 = vadd.f32 %v1504, %v1500
    %v1506 = vtanh.pop %v1505
    %v1507 = vsub.f32 1.0, %v1498
    %v1508 = vmul.f32 %v1507, %v1506
    %v1509 = vmul.f32 %v1498, %v1335
    %v1510 = vadd.f32 %v1508, %v1509
    %1511 = vmatprep.subr.mxu0 %v459
    %1512 = vmatpush1.msra.mxu0 %v458
    %1513 = vmatprep.subr.mxu0 %v456
    %1514 = vmatpush1.msra.mxu0 %v455
    %1515 = vmatprep.subr.mxu0 %v453
    %1516 = vmatpush1.msra.mxu0 %v452
    %1517 = vmatprep.subr.mxu0 %v450
    %1518 = vmatpush1.msra.mxu0 %v449
    %1519 = vmatprep.subr.mxu0 %v447
    %1520 = vmatpush1.msra.mxu0 %v446
    %1521 = vmatprep.subr.mxu0 %v444
    %1522 = vmatpush1.msra.mxu0 %v443
    %1523 = vmatprep.subr.mxu0 %v441
    %1524 = vmatpush1.msra.mxu0 %v440
    %1525 = vmatprep.subr.mxu0 %v438
    %1526 = vmatpush1.msra.mxu0 %v437
    %1527 = vmatprep.subr.mxu0 %v435
    %1528 = vmatpush1.msra.mxu0 %v434
    %1529 = vmatprep.subr.mxu0 %v432
    %1530 = vmatpush1.msra.mxu0 %v431
    %1531 = vmatprep.subr.mxu0 %v429
    %1532 = vmatpush1.msra.mxu0 %v428
    %1533 = vmatprep.subr.mxu0 %v426
    %1534 = vmatpush1.msra.mxu0 %v425
    %1535 = vmatprep.subr.mxu0 %v423
    %1536 = vmatpush1.msra.mxu0 %v422
    %1537 = vmatprep.subr.mxu0 %v420
    %1538 = vmatpush1.msra.mxu0 %v419
    %1539 = vmatprep.subr.mxu0 %v417
    %1540 = vmatpush1.msra.mxu0 %v416
    %1541 = vmatprep.subr.mxu0 %v414
    %1542 = vmatpush1.msra.mxu0 %v413
    %1543 = vmatprep.subr.mxu0 0.0
    %1544 = vmatpush2.msra.mxu0 0.0
    %1545 = vmatprep.subr.mxu0 0.0
    %1546 = vmatpush2.msra.mxu0 0.0
    %1547 = vmatprep.subr.mxu0 0.0
    %1548 = vmatpush2.msra.mxu0 0.0
    %1549 = vmatprep.subr.mxu0 0.0
    %1550 = vmatpush2.msra.mxu0 0.0
    %1551 = vmatprep.subr.mxu0 0.0
    %1552 = vmatpush2.msra.mxu0 0.0
    %1553 = vmatprep.subr.mxu0 0.0
    %1554 = vmatpush2.msra.mxu0 0.0
    %1555 = vmatprep.subr.mxu0 0.0
    %1556 = vmatpush2.msra.mxu0 0.0
    %1557 = vmatprep.subr.mxu0 0.0
    %1558 = vmatpush2.msra.mxu0 0.0
    %1559 = vmatprep.subr.mxu0 0.0
    %1560 = vmatpush2.msra.mxu0 0.0
    %1561 = vmatprep.subr.mxu0 0.0
    %1562 = vmatpush2.msra.mxu0 0.0
    %1563 = vmatprep.subr.mxu0 0.0
    %1564 = vmatpush2.msra.mxu0 0.0
    %1565 = vmatprep.subr.mxu0 0.0
    %1566 = vmatpush2.msra.mxu0 0.0
    %1567 = vmatprep.subr.mxu0 0.0
    %1568 = vmatpush2.msra.mxu0 0.0
    %1569 = vmatprep.subr.mxu0 0.0
    %1570 = vmatpush2.msra.mxu0 0.0
    %1571 = vmatprep.subr.mxu0 0.0
    %1572 = vmatpush2.msra.mxu0 0.0
    %1573 = vmatprep.subr.mxu0 0.0
    %1574 = vmatpush2.msra.mxu0 0.0
    %1575 = vmatprep.mubr.f32.mxu0 0.0
    %1576 = vmatmul.mubr.f32.gmra.mxu0 %v1510
    %v1577 = vpop.f32.mrf.mxu0
    %v1578 = vadd.f32 0.0, %v1577
    %v1579 = vpop.f32.mrf.mxu0
    %v1580 = vadd.f32 0.0, %v1579
    %1581 = vdwg.mxu0
    %1582 = vmatprep.subr.mxu0 0.0
    %1583 = vmatpush1.msra.mxu0 %v460
    %1584 = vmatprep.subr.mxu0 0.0
    %1585 = vmatpush1.msra.mxu0 %v457
    %1586 = vmatprep.subr.mxu0 0.0
    %1587 = vmatpush1.msra.mxu0 %v454
    %1588 = vmatprep.subr.mxu0 0.0
    %1589 = vmatpush1.msra.mxu0 %v451
    %1590 = vmatprep.subr.mxu0 0.0
    %1591 = vmatpush1.msra.mxu0 %v448
    %1592 = vmatprep.subr.mxu0 0.0
    %1593 = vmatpush1.msra.mxu0 %v445
    %1594 = vmatprep.subr.mxu0 0.0
    %1595 = vmatpush1.msra.mxu0 %v442
    %1596 = vmatprep.subr.mxu0 0.0
    %1597 = vmatpush1.msra.mxu0 %v439
    %1598 = vmatprep.subr.mxu0 0.0
    %1599 = vmatpush1.msra.mxu0 %v436
    %1600 = vmatprep.subr.mxu0 0.0
    %1601 = vmatpush1.msra.mxu0 %v433
    %1602 = vmatprep.subr.mxu0 0.0
    %1603 = vmatpush1.msra.mxu0 %v430
    %1604 = vmatprep.subr.mxu0 0.0
    %1605 = vmatpush1.msra.mxu0 %v427
    %1606 = vmatprep.subr.mxu0 0.0
    %1607 = vmatpush1.msra.mxu0 %v424
    %1608 = vmatprep.subr.mxu0 0.0
    %1609 = vmatpush1.msra.mxu0 %v421
    %1610 = vmatprep.subr.mxu0 0.0
    %1611 = vmatpush1.msra.mxu0 %v418
    %1612 = vmatprep.subr.mxu0 0.0
    %1613 = vmatpush1.msra.mxu0 %v415
    %1614 = vmatprep.subr.mxu0 0.0
    %1615 = vmatpush2.msra.mxu0 0.0
    %1616 = vmatprep.subr.mxu0 0.0
    %1617 = vmatpush2.msra.mxu0 0.0
    %1618 = vmatprep.subr.mxu0 0.0
    %1619 = vmatpush2.msra.mxu0 0.0
    %1620 = vmatprep.subr.mxu0 0.0
    %1621 = vmatpush2.msra.mxu0 0.0
    %1622 = vmatprep.subr.mxu0 0.0
    %1623 = vmatpush2.msra.mxu0 0.0
    %1624 = vmatprep.subr.mxu0 0.0
    %1625 = vmatpush2.msra.mxu0 0.0
    %1626 = vmatprep.subr.mxu0 0.0
    %1627 = vmatpush2.msra.mxu0 0.0
    %1628 = vmatprep.subr.mxu0 0.0
    %1629 = vmatpush2.msra.mxu0 0.0
    %1630 = vmatprep.subr.mxu0 0.0
    %1631 = vmatpush2.msra.mxu0 0.0
    %1632 = vmatprep.subr.mxu0 0.0
    %1633 = vmatpush2.msra.mxu0 0.0
    %1634 = vmatprep.subr.mxu0 0.0
    %1635 = vmatpush2.msra.mxu0 0.0
    %1636 = vmatprep.subr.mxu0 0.0
    %1637 = vmatpush2.msra.mxu0 0.0
    %1638 = vmatprep.subr.mxu0 0.0
    %1639 = vmatpush2.msra.mxu0 0.0
    %1640 = vmatprep.subr.mxu0 0.0
    %1641 = vmatpush2.msra.mxu0 0.0
    %1642 = vmatprep.subr.mxu0 0.0
    %1643 = vmatpush2.msra.mxu0 0.0
    %1644 = vmatprep.subr.mxu0 0.0
    %1645 = vmatpush2.msra.mxu0 0.0
    %1646 = vmatprep.mubr.f32.mxu0 0.0
    %1647 = vmatmul.mubr.f32.gmra.mxu0 %v1510
    %v1648 = vpop.f32.mrf.mxu0
    %v1649 = vadd.f32 0.0, %v1648
    %v1650 = vpop.f32.mrf.mxu0
    %1651 = vdwg.mxu0
    %v1652 = vlaneseq
    %v1653 = vshrl.u32 %v1652, 7
    %v1654 = vsub.s32 6, %v1653
    %v1655 = vrot.slane %v337, %v1654
    %v1656 = vadd.f32 %v1655, %v1578
    %v1657 = vxor.u32 %v1656, 2147483648
    %v1658 = vmul.f32 %v1657, 1.442695
    %v1659 = vpow.pop %v1658
    %v1660 = vadd.f32 %v1659, 1.0
    %v1661 = vrcp.pop %v1660
    %v1662 = vmul.f32 1.0, %v1661
    %v1663 = vlaneseq
    %v1664 = vshrl.u32 %v1663, 7
    %v1665 = vsub.s32 6, %v1664
    %v1666 = vrot.slane %v339, %v1665
    %v1667 = vadd.f32 %v1666, %v1580
    %v1668 = vxor.u32 %v1667, 2147483648
    %v1669 = vmul.f32 %v1668, 1.442695
    %v1670 = vpow.pop %v1669
    %v1671 = vadd.f32 %v1670, 1.0
    %v1672 = vrcp.pop %v1671
    %v1673 = vmul.f32 1.0, %v1672
    %v1674 = vadd.f32 %v1649, %v411
    %v1675 = vmul.f32 %v1662, %v1674
    %v1676 = vlaneseq
    %v1677 = vshrl.u32 %v1676, 7
    %v1678 = vsub.s32 6, %v1677
    %v1679 = vrot.slane %v408, %v1678
    %v1680 = vadd.f32 %v1679, %v1675
    %v1681 = vtanh.pop %v1680
    %v1682 = vsub.f32 1.0, %v1673
    %v1683 = vmul.f32 %v1682, %v1681
    %v1684 = vmul.f32 %v1673, %v1510
    %v1685 = vadd.f32 %v1683, %v1684
    %1686 = vmatprep.subr.mxu0 %v459
    %1687 = vmatpush1.msra.mxu0 %v458
    %1688 = vmatprep.subr.mxu0 %v456
    %1689 = vmatpush1.msra.mxu0 %v455
    %1690 = vmatprep.subr.mxu0 %v453
    %1691 = vmatpush1.msra.mxu0 %v452
    %1692 = vmatprep.subr.mxu0 %v450
    %1693 = vmatpush1.msra.mxu0 %v449
    %1694 = vmatprep.subr.mxu0 %v447
    %1695 = vmatpush1.msra.mxu0 %v446
    %1696 = vmatprep.subr.mxu0 %v444
    %1697 = vmatpush1.msra.mxu0 %v443
    %1698 = vmatprep.subr.mxu0 %v441
    %1699 = vmatpush1.msra.mxu0 %v440
    %1700 = vmatprep.subr.mxu0 %v438
    %1701 = vmatpush1.msra.mxu0 %v437
    %1702 = vmatprep.subr.mxu0 %v435
    %1703 = vmatpush1.msra.mxu0 %v434
    %1704 = vmatprep.subr.mxu0 %v432
    %1705 = vmatpush1.msra.mxu0 %v431
    %1706 = vmatprep.subr.mxu0 %v429
    %1707 = vmatpush1.msra.mxu0 %v428
    %1708 = vmatprep.subr.mxu0 %v426
    %1709 = vmatpush1.msra.mxu0 %v425
    %1710 = vmatprep.subr.mxu0 %v423
    %1711 = vmatpush1.msra.mxu0 %v422
    %1712 = vmatprep.subr.mxu0 %v420
    %1713 = vmatpush1.msra.mxu0 %v419
    %1714 = vmatprep.subr.mxu0 %v417
    %1715 = vmatpush1.msra.mxu0 %v416
    %1716 = vmatprep.subr.mxu0 %v414
    %1717 = vmatpush1.msra.mxu0 %v413
    %1718 = vmatprep.subr.mxu0 0.0
    %1719 = vmatpush2.msra.mxu0 0.0
    %1720 = vmatprep.subr.mxu0 0.0
    %1721 = vmatpush2.msra.mxu0 0.0
    %1722 = vmatprep.subr.mxu0 0.0
    %1723 = vmatpush2.msra.mxu0 0.0
    %1724 = vmatprep.subr.mxu0 0.0
    %1725 = vmatpush2.msra.mxu0 0.0
    %1726 = vmatprep.subr.mxu0 0.0
    %1727 = vmatpush2.msra.mxu0 0.0
    %1728 = vmatprep.subr.mxu0 0.0
    %1729 = vmatpush2.msra.mxu0 0.0
    %1730 = vmatprep.subr.mxu0 0.0
    %1731 = vmatpush2.msra.mxu0 0.0
    %1732 = vmatprep.subr.mxu0 0.0
    %1733 = vmatpush2.msra.mxu0 0.0
    %1734 = vmatprep.subr.mxu0 0.0
    %1735 = vmatpush2.msra.mxu0 0.0
    %1736 = vmatprep.subr.mxu0 0.0
    %1737 = vmatpush2.msra.mxu0 0.0
    %1738 = vmatprep.subr.mxu0 0.0
    %1739 = vmatpush2.msra.mxu0 0.0
    %1740 = vmatprep.subr.mxu0 0.0
    %1741 = vmatpush2.msra.mxu0 0.0
    %1742 = vmatprep.subr.mxu0 0.0
    %1743 = vmatpush2.msra.mxu0 0.0
    %1744 = vmatprep.subr.mxu0 0.0
    %1745 = vmatpush2.msra.mxu0 0.0
    %1746 = vmatprep.subr.mxu0 0.0
    %1747 = vmatpush2.msra.mxu0 0.0
    %1748 = vmatprep.subr.mxu0 0.0
    %1749 = vmatpush2.msra.mxu0 0.0
    %1750 = vmatprep.mubr.f32.mxu0 0.0
    %1751 = vmatmul.mubr.f32.gmra.mxu0 %v1685
    %v1752 = vpop.f32.mrf.mxu0
    %v1753 = vadd.f32 0.0, %v1752
    %v1754 = vpop.f32.mrf.mxu0
    %v1755 = vadd.f32 0.0, %v1754
    %1756 = vdwg.mxu0
    %1757 = vmatprep.subr.mxu0 0.0
    %1758 = vmatpush1.msra.mxu0 %v460
    %1759 = vmatprep.subr.mxu0 0.0
    %1760 = vmatpush1.msra.mxu0 %v457
    %1761 = vmatprep.subr.mxu0 0.0
    %1762 = vmatpush1.msra.mxu0 %v454
    %1763 = vmatprep.subr.mxu0 0.0
    %1764 = vmatpush1.msra.mxu0 %v451
    %1765 = vmatprep.subr.mxu0 0.0
    %1766 = vmatpush1.msra.mxu0 %v448
    %1767 = vmatprep.subr.mxu0 0.0
    %1768 = vmatpush1.msra.mxu0 %v445
    %1769 = vmatprep.subr.mxu0 0.0
    %1770 = vmatpush1.msra.mxu0 %v442
    %1771 = vmatprep.subr.mxu0 0.0
    %1772 = vmatpush1.msra.mxu0 %v439
    %1773 = vmatprep.subr.mxu0 0.0
    %1774 = vmatpush1.msra.mxu0 %v436
    %1775 = vmatprep.subr.mxu0 0.0
    %1776 = vmatpush1.msra.mxu0 %v433
    %1777 = vmatprep.subr.mxu0 0.0
    %1778 = vmatpush1.msra.mxu0 %v430
    %1779 = vmatprep.subr.mxu0 0.0
    %1780 = vmatpush1.msra.mxu0 %v427
    %1781 = vmatprep.subr.mxu0 0.0
    %1782 = vmatpush1.msra.mxu0 %v424
    %1783 = vmatprep.subr.mxu0 0.0
    %1784 = vmatpush1.msra.mxu0 %v421
    %1785 = vmatprep.subr.mxu0 0.0
    %1786 = vmatpush1.msra.mxu0 %v418
    %1787 = vmatprep.subr.mxu0 0.0
    %1788 = vmatpush1.msra.mxu0 %v415
    %1789 = vmatprep.subr.mxu0 0.0
    %1790 = vmatpush2.msra.mxu0 0.0
    %1791 = vmatprep.subr.mxu0 0.0
    %1792 = vmatpush2.msra.mxu0 0.0
    %1793 = vmatprep.subr.mxu0 0.0
    %1794 = vmatpush2.msra.mxu0 0.0
    %1795 = vmatprep.subr.mxu0 0.0
    %1796 = vmatpush2.msra.mxu0 0.0
    %1797 = vmatprep.subr.mxu0 0.0
    %1798 = vmatpush2.msra.mxu0 0.0
    %1799 = vmatprep.subr.mxu0 0.0
    %1800 = vmatpush2.msra.mxu0 0.0
    %1801 = vmatprep.subr.mxu0 0.0
    %1802 = vmatpush2.msra.mxu0 0.0
    %1803 = vmatprep.subr.mxu0 0.0
    %1804 = vmatpush2.msra.mxu0 0.0
    %1805 = vmatprep.subr.mxu0 0.0
    %1806 = vmatpush2.msra.mxu0 0.0
    %1807 = vmatprep.subr.mxu0 0.0
    %1808 = vmatpush2.msra.mxu0 0.0
    %1809 = vmatprep.subr.mxu0 0.0
    %1810 = vmatpush2.msra.mxu0 0.0
    %1811 = vmatprep.subr.mxu0 0.0
    %1812 = vmatpush2.msra.mxu0 0.0
    %1813 = vmatprep.subr.mxu0 0.0
    %1814 = vmatpush2.msra.mxu0 0.0
    %1815 = vmatprep.subr.mxu0 0.0
    %1816 = vmatpush2.msra.mxu0 0.0
    %1817 = vmatprep.subr.mxu0 0.0
    %1818 = vmatpush2.msra.mxu0 0.0
    %1819 = vmatprep.subr.mxu0 0.0
    %1820 = vmatpush2.msra.mxu0 0.0
    %1821 = vmatprep.mubr.f32.mxu0 0.0
    %1822 = vmatmul.mubr.f32.gmra.mxu0 %v1685
    %v1823 = vpop.f32.mrf.mxu0
    %v1824 = vadd.f32 0.0, %v1823
    %v1825 = vpop.f32.mrf.mxu0
    %1826 = vdwg.mxu0
    %v1827 = vlaneseq
    %v1828 = vshrl.u32 %v1827, 7
    %v1829 = vsub.s32 7, %v1828
    %v1830 = vrot.slane %v337, %v1829
    %v1831 = vadd.f32 %v1830, %v1753
    %v1832 = vxor.u32 %v1831, 2147483648
    %v1833 = vmul.f32 %v1832, 1.442695
    %v1834 = vpow.pop %v1833
    %v1835 = vadd.f32 %v1834, 1.0
    %v1836 = vrcp.pop %v1835
    %v1837 = vmul.f32 1.0, %v1836
    %v1838 = vlaneseq
    %v1839 = vshrl.u32 %v1838, 7
    %v1840 = vsub.s32 7, %v1839
    %v1841 = vrot.slane %v339, %v1840
    %v1842 = vadd.f32 %v1841, %v1755
    %v1843 = vxor.u32 %v1842, 2147483648
    %v1844 = vmul.f32 %v1843, 1.442695
    %v1845 = vpow.pop %v1844
    %v1846 = vadd.f32 %v1845, 1.0
    %v1847 = vrcp.pop %v1846
    %v1848 = vmul.f32 1.0, %v1847
    %v1849 = vadd.f32 %v1824, %v411
    %v1850 = vmul.f32 %v1837, %v1849
    %v1851 = vlaneseq
    %v1852 = vshrl.u32 %v1851, 7
    %v1853 = vsub.s32 7, %v1852
    %v1854 = vrot.slane %v408, %v1853
    %v1855 = vadd.f32 %v1854, %v1850
    %v1856 = vtanh.pop %v1855
    %v1857 = vsub.f32 1.0, %v1848
    %v1858 = vmul.f32 %v1857, %v1856
    %v1859 = vmul.f32 %v1848, %v1685
    %v1860 = vadd.f32 %v1858, %v1859
    %v1862 = vrot.slane %v810, 7
    %v1865 = vrot.slane %v985, 6
    %v1868 = vrot.slane %v1160, 5
    %v1871 = vrot.slane %v1335, 4
    %v1874 = vrot.slane %v1510, 3
    %v1877 = vrot.slane %v1685, 2
    %v1880 = vrot.slane %v1860, 1
    %v1882 = vsel %vm105, %v635, %v1862
    %v1883 = vsel %vm107, %v1882, %v1865
    %v1884 = vsel %vm109, %v1883, %v1868
    %v1885 = vsel %vm111, %v1884, %v1871
    %v1886 = vsel %vm113, %v1885, %v1874
    %v1887 = vsel %vm115, %v1886, %v1877
    %v1888 = vsel %vm117, %v1887, %v1880
    %1889 = vst [vmem:[%s7] sm:$0xff] %v1888
    // Predicated region
    $region38: #{encoder_rnn_forward_seq.1} parent=1 // pred_check
      _
    $region39: #{encoder_rnn_forward_seq.1} parent=1 // pred_check_branch
      %1891 = sbr.rel (0) target = $region41
    $region40: #{encoder_rnn_forward_seq.1} parent=1 // pred_region
      _
    $region41: #{encoder_rnn_forward_seq.1} parent=1 // pred_fallthru
      _
    // Predicated region
    $region42: #{encoder_rnn_forward_seq.1} parent=1 // pred_check
      _
    $region43: #{encoder_rnn_forward_seq.1} parent=1 // pred_check_branch
      %1893 = sbr.rel (0) target = $region45
    $region44: #{encoder_rnn_forward_seq.1} parent=1 // pred_region
      _
    $region45: #{encoder_rnn_forward_seq.1} parent=1 // pred_fallthru
      _
    %1894 = vsyncpa [#allocation5], 1
    %1895 = vsyncpa [#allocation7], 1

</llo_original>
